<compile_context>
chip_gen: v7x
topology: tpu7x:2x2x1
jax: 0.10.0
libtpu: 0.0.40
codegen_flags: <defaults>
</compile_context>

<pallas_src>
import functools

import jax
import jax.numpy as jnp
from jax import lax
from jax.experimental import pallas as pl
from jax.experimental.pallas import tpu as pltpu

_VMEM_LIMIT = 32 * 1024 * 1024  # safe on v5e(128M)/v6e(128M)/v7x(64M physical)


# ----------------------------------------------------------------------------
# helpers
# ----------------------------------------------------------------------------
def _round_up(x, m):
    return ((x + m - 1) // m) * m


def _cparams(*sem):
    return pltpu.CompilerParams(dimension_semantics=sem,
                                vmem_limit_bytes=_VMEM_LIMIT)


def _fold(blk):
    """Fold BN scale into the conv weight (bf16); keep bias in f32."""
    w = blk["w"]
    s = blk.get("s")
    bias = blk.get("b")
    w_eff = (w if s is None else w * s).astype(jnp.bfloat16)
    cout = w.shape[1]
    if bias is None:
        bias = jnp.zeros((1, cout), jnp.float32)
    else:
        bias = jnp.asarray(bias, jnp.float32).reshape(1, cout)
    return w_eff, bias


# ----------------------------------------------------------------------------
# fused pointwise-conv / MLP kernel
# ----------------------------------------------------------------------------
def _fused_mlp_kernel(*refs, acts, slope):
    x_ref, o_ref = refs[0], refs[-1]
    h = x_ref[...]
    for li, act in enumerate(acts):
        w = refs[1 + 2 * li][...]
        b = refs[2 + 2 * li][...]
        h = jnp.dot(h.astype(jnp.bfloat16), w,
                    preferred_element_type=jnp.float32) + b
        if act == "leaky":
            h = jnp.where(h > 0, h, slope * h)
        elif act == "relu":
            h = jnp.maximum(h, 0.0)
    o_ref[...] = h.astype(o_ref.dtype)


def fused_mlp(x, layers, acts, out_dtype=jnp.bfloat16,
              pad_out_lanes=False, slope=0.2):
    """Chain of 1x1 conv / linear layers fused into one pallas_call.

    layers: list of (w_bf16 (cin,cout), bias_f32 (1,cout)).  All weights stay
    resident in VMEM; only the row tile streams, so chained layers never
    round-trip HBM.
    """
    m, cin = x.shape
    layers = list(layers)
    couts = [w.shape[1] for w, _ in layers]
    cout = couts[-1]
    out_cols = cout
    if pad_out_lanes and cout % 128 != 0:
        # lane-dense store for narrow heads (STN 9, seg 17); sliced outside.
        out_cols = _round_up(cout, 128)
        w_l, b_l = layers[-1]
        layers[-1] = (jnp.pad(w_l, ((0, 0), (0, out_cols - cout))),
                      jnp.pad(b_l, ((0, 0), (0, out_cols - cout))))
        couts[-1] = out_cols
    per_row = 4 * (cin + sum(couts))            # f32-equivalent bytes per row
    tm = 1024
    while tm > 128 and per_row * tm * 3 > (12 << 20):
        tm //= 2
    tm = min(tm, _round_up(m, 8))
    m_pad = _round_up(m, tm)
    if m_pad != m:
        x = jnp.pad(x, ((0, m_pad - m), (0, 0)))

    operands = [x]
    in_specs = [pl.BlockSpec((tm, cin), lambda i: (i, 0))]
    for w_l, b_l in layers:
        operands += [w_l, b_l]
        in_specs += [pl.BlockSpec(w_l.shape, lambda i: (0, 0)),
                     pl.BlockSpec(b_l.shape, lambda i: (0, 0))]
    kernel = functools.partial(_fused_mlp_kernel, acts=tuple(acts), slope=slope)
    y = pl.pallas_call(
        kernel,
        out_shape=jax.ShapeDtypeStruct((m_pad, out_cols), out_dtype),
        grid=(m_pad // tm,),
        in_specs=in_specs,
        out_specs=pl.BlockSpec((tm, out_cols), lambda i: (i, 0)),
        compiler_params=_cparams("parallel"),
    )(*operands)
    if m_pad != m or out_cols != cout:
        y = y[:m, :cout]
    return y


def pw_conv(x, w, scale=None, bias=None, act="none",
            out_dtype=jnp.bfloat16, slope=0.2):
    return fused_mlp(x, [_fold(dict(w=w, s=scale, b=bias))], (act,),
                     out_dtype=out_dtype, slope=slope)


def pw_blk(x, blk, act="leaky", out_dtype=jnp.bfloat16):
    return fused_mlp(x, [_fold(blk)], (act,), out_dtype=out_dtype)


# ----------------------------------------------------------------------------
# streaming top-k kNN kernel (no (b, n, n) matrix, no lax.top_k)
# ----------------------------------------------------------------------------
def _knn_kernel(q_ref, kpt_ref, ksq_ref, idx_ref, bd_sc, bi_sc, *, k_nn, n_real):
    ki = pl.program_id(2)

    @pl.when(ki == 0)
    def _():
        bd_sc[...] = jnp.full(bd_sc.shape, jnp.inf, jnp.float32)
        bi_sc[...] = jnp.full(bi_sc.shape, -1, jnp.int32)

    q = q_ref[0].astype(jnp.float32)                           # (tq, c)
    kp = kpt_ref[0].astype(jnp.float32)                        # (tkv, c)
    cross = lax.dot_general(q, kp, (((1,), (1,)), ((), ())),
                            preferred_element_type=jnp.float32)
    # rank by |k|^2 - 2 q.k  (|q|^2 is a per-row constant -> dropped)
    d = ksq_ref[0] - 2.0 * cross                               # (tq, tkv)
    tkv = d.shape[1]
    col = ki * tkv + lax.broadcasted_iota(jnp.int32, d.shape, 1)
    d = jnp.where(col < n_real, d, jnp.inf)

    cand_d = jnp.concatenate([bd_sc[...], d], axis=1)
    cand_i = jnp.concatenate([bi_sc[...], col], axis=1)
    keep_d, keep_i = [], []
    for _ in range(k_nn):
        mn = jnp.min(cand_d, axis=1, keepdims=True)
        hit = cand_d == mn
        sel = jnp.min(jnp.where(hit, cand_i, jnp.iinfo(jnp.int32).max),
                      axis=1, keepdims=True)
        keep_d.append(mn)
        keep_i.append(sel)
        cand_d = jnp.where(cand_i == sel, jnp.inf, cand_d)
    bd_sc[...] = jnp.concatenate(keep_d, axis=1)
    bi_sc[...] = jnp.concatenate(keep_i, axis=1)

    @pl.when(ki == pl.num_programs(2) - 1)
    def _():
        idx_ref[0] = bi_sc[...]


def knn_idx(pts, k_nn):
    """pts: (b, n, c).  Returns (b, n, k_nn) int32 indices (includes self)."""
    b, n, c = pts.shape
    assert n >= k_nn
    tq = _round_up(n, 8) if n <= 128 else 128
    tkv = _round_up(n, 8) if n <= 512 else 512
    nq_pad = _round_up(n, tq)
    nk_pad = _round_up(n, tkv)
    ptsf = pts.astype(jnp.float32)
    q = ptsf if nq_pad == n else jnp.pad(ptsf, ((0, 0), (0, nq_pad - n), (0, 0)))
    kp = ptsf if nk_pad == n else jnp.pad(ptsf, ((0, 0), (0, nk_pad - n), (0, 0)))
    ksq = jnp.sum(kp * kp, axis=-1)[:, None, :]                # (b, 1, nk_pad)
    kernel = functools.partial(_knn_kernel, k_nn=k_nn, n_real=n)
    idx = pl.pallas_call(
        kernel,
        out_shape=jax.ShapeDtypeStruct((b, nq_pad, k_nn), jnp.int32),
        grid=(b, nq_pad // tq, nk_pad // tkv),
        in_specs=[
            pl.BlockSpec((1, tq, c), lambda bi, qi, ki: (bi, qi, 0)),
            pl.BlockSpec((1, tkv, c), lambda bi, qi, ki: (bi, ki, 0)),
            pl.BlockSpec((1, 1, tkv), lambda bi, qi, ki: (bi, 0, ki)),
        ],
        out_specs=pl.BlockSpec((1, tq, k_nn), lambda bi, qi, ki: (bi, qi, 0)),
        scratch_shapes=[pltpu.VMEM((tq, k_nn), jnp.float32),
                        pltpu.VMEM((tq, k_nn), jnp.int32)],
        compiler_params=_cparams("parallel", "parallel", "arbitrary"),
    )(q, kp, ksq)
    return idx[:, :n] if nq_pad != n else idx


# ----------------------------------------------------------------------------
# flash cross-attention
# ----------------------------------------------------------------------------
def _flash_attn_kernel(q_ref, k_ref, v_ref, o_ref, m_sc, l_sc, acc_sc,
                       *, scale, kv_len, mask_kv):
    ki = pl.program_id(2)

    @pl.when(ki == 0)
    def _():
        m_sc[...] = jnp.full(m_sc.shape, -jnp.inf, m_sc.dtype)
        l_sc[...] = jnp.zeros(l_sc.shape, l_sc.dtype)
        acc_sc[...] = jnp.zeros(acc_sc.shape, acc_sc.dtype)

    # fold 1/sqrt(dh) into the (tq, dh) q tile instead of the score tile
    q = (q_ref[0].astype(jnp.float32) * scale).astype(jnp.bfloat16)
    k = k_ref[0].astype(jnp.bfloat16)
    s = lax.dot_general(q, k, (((1,), (1,)), ((), ())),
                        preferred_element_type=jnp.float32)      # (tq, tkv)
    if mask_kv:
        col = ki * s.shape[1] + lax.broadcasted_iota(jnp.int32, s.shape, 1)
        s = jnp.where(col < kv_len, s, -1e30)
    m_prev = m_sc[...]
    m_new = jnp.maximum(m_prev, jnp.max(s, axis=-1, keepdims=True))
    alpha = jnp.exp(m_prev - m_new)
    p = jnp.exp(s - m_new)
    l_sc[...] = alpha * l_sc[...] + jnp.sum(p, axis=-1, keepdims=True)
    acc_sc[...] = alpha * acc_sc[...] + jnp.dot(
        p.astype(jnp.bfloat16), v_ref[0].astype(jnp.bfloat16),
        preferred_element_type=jnp.float32)
    m_sc[...] = m_new

    @pl.when(ki == pl.num_programs(2) - 1)
    def _():
        o_ref[0] = (acc_sc[...] *
                    pl.reciprocal(l_sc[...], approx=True)).astype(o_ref.dtype)


def cross_attention(q, k, v):
    b, n, dh = q.shape
    m = k.shape[1]
    tq = _round_up(n, 8) if n <= 256 else 256
    tkv = _round_up(m, 8) if m <= 512 else 512
    n_pad = _round_up(n, tq)
    m_pad = _round_up(m, tkv)
    if n_pad != n:
        q = jnp.pad(q, ((0, 0), (0, n_pad - n), (0, 0)))
    if m_pad != m:
        k = jnp.pad(k, ((0, 0), (0, m_pad - m), (0, 0)))
        v = jnp.pad(v, ((0, 0), (0, m_pad - m), (0, 0)))
    kernel = functools.partial(_flash_attn_kernel, scale=float(dh) ** -0.5,
                               kv_len=m, mask_kv=(m_pad != m))
    out = pl.pallas_call(
        kernel,
        out_shape=jax.ShapeDtypeStruct((b, n_pad, dh), jnp.bfloat16),
        grid=(b, n_pad // tq, m_pad // tkv),
        in_specs=[
            pl.BlockSpec((1, tq, dh), lambda bi, qi, ki: (bi, qi, 0)),
            pl.BlockSpec((1, tkv, dh), lambda bi, qi, ki: (bi, ki, 0)),
            pl.BlockSpec((1, tkv, dh), lambda bi, qi, ki: (bi, ki, 0)),
        ],
        out_specs=pl.BlockSpec((1, tq, dh), lambda bi, qi, ki: (bi, qi, 0)),
        scratch_shapes=[
            pltpu.VMEM((tq, 1), jnp.float32),
            pltpu.VMEM((tq, 1), jnp.float32),
            pltpu.VMEM((tq, dh), jnp.float32),
        ],
        compiler_params=_cparams("parallel", "parallel", "arbitrary"),
    )(q, k, v)
    return out[:, :n] if n_pad != n else out


# ----------------------------------------------------------------------------
# grouped vector attention (PTv2-style), PE projection fused in-kernel
# ----------------------------------------------------------------------------
def _gva_kernel(q_ref, knb_ref, vnb_ref, rel_ref, wpe_ref, wg_ref, ex_ref, o_ref):
    knb = knb_ref[...].astype(jnp.float32)                     # (tn, K, C)
    tn, k, c = knb.shape
    g = wg_ref.shape[1]
    pe = jnp.dot(rel_ref[...].reshape(tn * k, 3).astype(jnp.bfloat16),
                 wpe_ref[...], preferred_element_type=jnp.float32)
    pe3 = pe.reshape(tn, k, c)
    q = q_ref[...].astype(jnp.float32)
    rel_q = q[:, None, :] - knb + pe3                          # (tn, K, C)
    # group-granularity logits: (tn*K, G) instead of (tn*K, C)
    s = jnp.dot(rel_q.reshape(tn * k, c).astype(jnp.bfloat16), wg_ref[...],
                preferred_element_type=jnp.float32).reshape(tn, k, g)
    s = s - jnp.max(s, axis=1, keepdims=True)
    p = jnp.exp(s)
    p = p * pl.reciprocal(jnp.sum(p, axis=1, keepdims=True), approx=True)
    # expand groups -> channels with a tiny 0/1 (G, C) matmul
    pc = jnp.dot(p.reshape(tn * k, g).astype(jnp.bfloat16), ex_ref[...],
                 preferred_element_type=jnp.float32).reshape(tn, k, c)
    v = vnb_ref[...].astype(jnp.float32) + pe3
    o_ref[...] = jnp.sum(pc * v, axis=1).astype(o_ref.dtype)


def gva_attention(q, knb, vnb, rel, wpe, wg, expand):
    n, k, c = knb.shape
    tn = _round_up(n, 8) if n <= 128 else 128
    n_pad = _round_up(n, tn)
    if n_pad != n:
        q = jnp.pad(q, ((0, n_pad - n), (0, 0)))
        knb = jnp.pad(knb, ((0, n_pad - n), (0, 0), (0, 0)))
        vnb = jnp.pad(vnb, ((0, n_pad - n), (0, 0), (0, 0)))
        rel = jnp.pad(rel, ((0, n_pad - n), (0, 0), (0, 0)))
    out = pl.pallas_call(
        _gva_kernel,
        out_shape=jax.ShapeDtypeStruct((n_pad, c), jnp.bfloat16),
        grid=(n_pad // tn,),
        in_specs=[
            pl.BlockSpec((tn, c), lambda i: (i, 0)),
            pl.BlockSpec((tn, k, c), lambda i: (i, 0, 0)),
            pl.BlockSpec((tn, k, c), lambda i: (i, 0, 0)),
            pl.BlockSpec((tn, k, 3), lambda i: (i, 0, 0)),
            pl.BlockSpec(wpe.shape, lambda i: (0, 0)),
            pl.BlockSpec(wg.shape, lambda i: (0, 0)),
            pl.BlockSpec(expand.shape, lambda i: (0, 0)),
        ],
        out_specs=pl.BlockSpec((tn, c), lambda i: (i, 0)),
        compiler_params=_cparams("parallel"),
    )(q, knb, vnb, rel, wpe, wg, expand)
    return out[:n] if n_pad != n else out


def gva_layer(p, coord, feat, ref_idx):
    """Simplified PointTransformerV2Layer (grouped vector attention).
    TODO(synk): weight-encoding MLP reduced to one linear; additive PE only."""
    n, c = feat.shape
    qkv = pw_conv(feat, p["wqkv"], act="none")                 # fused q/k/v
    q, kk, vv = qkv[:, :c], qkv[:, c:2 * c], qkv[:, 2 * c:]
    # TODO(synk): neighbour gathers remain XLA gathers (no in-kernel DMA gather)
    knb = kk[ref_idx]                                          # (N, K, C)
    vnb = vv[ref_idx]
    rel = (coord[ref_idx] - coord[:, None, :]).astype(jnp.float32)   # (N, K, 3)
    g = p["groups"]
    expand = jnp.repeat(jnp.eye(g, dtype=jnp.bfloat16), c // g, axis=1)  # (G, C)
    return gva_attention(q, knb, vnb, rel,
                         p["wpe"].astype(jnp.bfloat16),
                         p["wg"].astype(jnp.bfloat16), expand)


def pt_encoder(p, coord, feat, ref_idx):
    # TODO(synk): PTv2 grid pooling / cluster approximated by identity cluster
    # (no downsampling); the torch forward immediately un-pools with `cluster`.
    h = pw_blk(feat, p["proj"], act="leaky")
    for blk in p["blocks"]:
        h = h + gva_layer(blk, coord, h, ref_idx)
    return h


# ----------------------------------------------------------------------------
# graph attention / edge conv (edge 1x1 conv fused in-kernel)
# ----------------------------------------------------------------------------
def _graph_att_kernel(e_ref, wc_ref, bc_ref, wa_ref, o_ref, *, slope):
    e = e_ref[...]                                             # (tm, K, 2*fd)
    tm, k, c2 = e.shape
    fd = c2 // 2
    od = wc_ref.shape[1]
    ef = e.reshape(tm * k, c2).astype(jnp.bfloat16)
    feat = jnp.dot(ef, wc_ref[...], preferred_element_type=jnp.float32) + bc_ref[...]
    feat = jnp.where(feat > 0, feat, slope * feat)
    delta = e[..., :fd].reshape(tm * k, fd).astype(jnp.bfloat16)
    s = jnp.dot(delta, wa_ref[...], preferred_element_type=jnp.float32)
    s = jnp.where(s > 0, s, slope * s)
    s = s.reshape(tm, k, od)
    s = s - jnp.max(s, axis=1, keepdims=True)
    p = jnp.exp(s)
    p = p * pl.reciprocal(jnp.sum(p, axis=1, keepdims=True), approx=True)
    o_ref[...] = jnp.sum(p * feat.reshape(tm, k, od), axis=1).astype(o_ref.dtype)


def graph_attention(conv_blk, att_w, edge, slope=0.2):
    """DGCNN-style neighbour attention with the edge 1x1 conv fused in-kernel.
    TODO(synk): GraphAttention definition unavailable; per-channel softmax over
    the K neighbours driven by geometric offsets."""
    b, n, k, c2 = edge.shape
    wc, bc = _fold(conv_blk)
    wa = att_w.astype(jnp.bfloat16)
    od = wc.shape[1]
    e = edge.reshape(b * n, k, c2)
    m = b * n
    tm = _round_up(m, 8) if m <= 256 else 256
    m_pad = _round_up(m, tm)
    if m_pad != m:
        e = jnp.pad(e, ((0, m_pad - m), (0, 0), (0, 0)))
    kernel = functools.partial(_graph_att_kernel, slope=slope)
    out = pl.pallas_call(
        kernel,
        out_shape=jax.ShapeDtypeStruct((m_pad, od), jnp.bfloat16),
        grid=(m_pad // tm,),
        in_specs=[
            pl.BlockSpec((tm, k, c2), lambda i: (i, 0, 0)),
            pl.BlockSpec(wc.shape, lambda i: (0, 0)),
            pl.BlockSpec(bc.shape, lambda i: (0, 0)),
            pl.BlockSpec(wa.shape, lambda i: (0, 0)),
        ],
        out_specs=pl.BlockSpec((tm, od), lambda i: (i, 0)),
        compiler_params=_cparams("parallel"),
    )(e, wc, bc, wa)
    return out[:m].reshape(b, n, od)


def _conv_edge_max_kernel(e_ref, w_ref, b_ref, o_ref, *, slope):
    e = e_ref[...]                                             # (tm, K, cin)
    tm, k, cin = e.shape
    od = w_ref.shape[1]
    y = jnp.dot(e.reshape(tm * k, cin).astype(jnp.bfloat16), w_ref[...],
                preferred_element_type=jnp.float32) + b_ref[...]
    y = jnp.where(y > 0, y, slope * y)
    o_ref[...] = jnp.max(y.reshape(tm, k, od), axis=1).astype(o_ref.dtype)


def conv_edge_max(edge, blk, slope=0.2):
    """1x1 conv on (b, n, k, c) edge features fused with the max over k."""
    b, n, k, cin = edge.shape
    w, bias = _fold(blk)
    od = w.shape[1]
    e = edge.reshape(b * n, k, cin)
    m = b * n
    tm = _round_up(m, 8) if m <= 256 else 256
    m_pad = _round_up(m, tm)
    if m_pad != m:
        e = jnp.pad(e, ((0, m_pad - m), (0, 0), (0, 0)))
    kernel = functools.partial(_conv_edge_max_kernel, slope=slope)
    out = pl.pallas_call(
        kernel,
        out_shape=jax.ShapeDtypeStruct((m_pad, od), jnp.bfloat16),
        grid=(m_pad // tm,),
        in_specs=[
            pl.BlockSpec((tm, k, cin), lambda i: (i, 0, 0)),
            pl.BlockSpec(w.shape, lambda i: (0, 0)),
            pl.BlockSpec(bias.shape, lambda i: (0, 0)),
        ],
        out_specs=pl.BlockSpec((tm, od), lambda i: (i, 0)),
        compiler_params=_cparams("parallel"),
    )(e, w, bias)
    return out[:m].reshape(b, n, od)


# ----------------------------------------------------------------------------
# module pieces
# ----------------------------------------------------------------------------
def conv2d_pw_nhwc(x, blk, act="leaky"):
    b, h, w, c = x.shape
    y = pw_blk(x.reshape(-1, c), blk, act)
    return y.reshape(b, h, w, blk["w"].shape[1])


def attention_fusion(p, data, queries):
    """Perceiver-style cross attention (depth=0), single head, residual.
    TODO(synk): AttentionFusion LayerNorms / FFN omitted (definition missing)."""
    b, m, d = data.shape
    _, n, ld = queries.shape
    dh = p["wq"].shape[1]
    q = pw_conv(queries.reshape(b * n, ld), p["wq"]).reshape(b, n, dh)
    kv = pw_conv(data.reshape(b * m, d), p["wkv"]).reshape(b, m, 2 * dh)
    att = cross_attention(q, kv[..., :dh], kv[..., dh:])
    out = pw_conv(att.reshape(b * n, dh), p["wo"]).reshape(b, n, ld)
    return (queries + out).astype(jnp.bfloat16)


def get_graph_feature_pair(coord, norm, k_nn):
    """DGCNN-style edge features; kNN in the coord feature space."""
    idx = knn_idx(coord, k_nn)

    def edge(ft):
        # TODO(synk): neighbour gather stays in XLA (no in-kernel DMA gather)
        nbr = jax.vmap(lambda f, i: f[i])(ft, idx)             # (b, n, k, c)
        ctr = jnp.broadcast_to(ft[:, :, None, :], nbr.shape)
        return jnp.concatenate([nbr - ctr, ctr], axis=-1)      # (b, n, k, 2c)

    return edge(coord), edge(norm)


def stn3d(p, x):
    """PointNet STN3d: fused conv 64/128/1024 -> global max -> fused fc 512/256/9."""
    b, n, cin = x.shape
    rows = x.reshape(b * n, cin)
    h = fused_mlp(rows, [_fold(p["c1"]), _fold(p["c2"]), _fold(p["c3"])],
                  ("relu", "relu", "relu"))
    h = h.reshape(b, n, 1024).max(axis=1)                      # global max pool
    t = fused_mlp(h, [_fold(p["f1"]), _fold(p["f2"]),
                      (p["f3w"].astype(jnp.bfloat16),
                       jnp.asarray(p["f3b"], jnp.float32))],
                  ("relu", "relu", "none"),
                  out_dtype=jnp.float32, pad_out_lanes=True)
    return (t + jnp.eye(3, dtype=jnp.float32).reshape(1, 9)).reshape(b, 3, 3)


def apply_stn(p, feat):
    trans = stn3d(p, feat)
    xyz = jnp.einsum("bnc,bcd->bnd", feat[:, :, :3], trans)    # tiny 3x3 bmm
    return jnp.concatenate([xyz, feat[:, :, 3:]], axis=2)


def space_to_depth_nhwc(x, r):
    b, h, w, c = x.shape
    x = x.reshape(b, h // r, r, w // r, r, c)
    return jnp.transpose(x, (0, 1, 3, 2, 4, 5)).reshape(b, h // r, w // r, r * r * c)


def fake_backbone(p, imgs_nhwc):
    """TODO(synk): pretrained timm resnet34 replaced by a deterministic
    space-to-depth + pointwise-conv pyramid with matching channels/strides."""
    h = space_to_depth_nhwc(imgs_nhwc, 8)                      # (B, h/8, w/8, 256)
    f3 = conv2d_pw_nhwc(h, p["w3"])                            # 128
    h = space_to_depth_nhwc(f3, 2)
    f4 = conv2d_pw_nhwc(h, p["w4"])                            # 256
    h = space_to_depth_nhwc(f4, 2)
    f5 = conv2d_pw_nhwc(h, p["w5"])                            # 512
    return f3, f4, f5


# ----------------------------------------------------------------------------
# deterministic parameter construction
# ----------------------------------------------------------------------------
class KeyGen:
    def __init__(self, seed=0):
        self.key = jax.random.PRNGKey(seed)

    def __call__(self):
        self.key, sub = jax.random.split(self.key)
        return sub


def glorot(key, shape):
    fan_in, fan_out = shape[0], shape[-1]
    lim = (6.0 / (fan_in + fan_out)) ** 0.5
    return jax.random.uniform(key, shape, jnp.float32, -lim, lim)


def make_blk(kg, cin, cout):
    return dict(w=glorot(kg(), (cin, cout)),
                s=1.0 + 0.05 * jax.random.normal(kg(), (1, cout), jnp.float32),
                b=0.05 * jax.random.normal(kg(), (1, cout), jnp.float32))


def gva_params(kg, c, g):
    return dict(wqkv=glorot(kg(), (c, 3 * c)), wpe=glorot(kg(), (3, c)),
                wg=glorot(kg(), (c, g)), groups=g)


def af_params(kg, dim, latent, head):
    return dict(wq=glorot(kg(), (latent, head)), wkv=glorot(kg(), (dim, 2 * head)),
                wo=glorot(kg(), (head, latent)))


def stn_params(kg, cin):
    return dict(c1=make_blk(kg, cin, 64), c2=make_blk(kg, 64, 128),
                c3=make_blk(kg, 128, 1024), f1=make_blk(kg, 1024, 512),
                f2=make_blk(kg, 512, 256), f3w=glorot(kg(), (256, 9)),
                f3b=0.05 * jax.random.normal(kg(), (1, 9), jnp.float32))


def make_params(seed=0, num_classes=17):
    kg = KeyGen(seed)
    P = {}
    P["pe_proj"] = make_blk(kg, 24, 64)
    P["pe_gva"] = gva_params(kg, 64, 8)
    P["enc1"] = dict(proj=make_blk(kg, 64, 64),
                     blocks=[gva_params(kg, 64, 16) for _ in range(2)])
    P["enc2"] = dict(proj=make_blk(kg, 64, 128),
                     blocks=[gva_params(kg, 128, 32) for _ in range(2)])
    P["enc3"] = dict(proj=make_blk(kg, 128, 256),
                     blocks=[gva_params(kg, 256, 64) for _ in range(2)])
    P["stn_c"] = stn_params(kg, 12)
    P["stn_n"] = stn_params(kg, 12)
    P["conv1_c"] = make_blk(kg, 24, 32);   P["conv1_n"] = make_blk(kg, 24, 32)
    P["conv2_c"] = make_blk(kg, 64, 64);   P["conv2_n"] = make_blk(kg, 64, 64)
    P["conv3_c"] = make_blk(kg, 128, 128); P["conv3_n"] = make_blk(kg, 128, 128)
    P["gatt1"] = dict(w=glorot(kg(), (12, 32)))
    P["gatt2"] = dict(w=glorot(kg(), (32, 64)))
    P["gatt3"] = dict(w=glorot(kg(), (64, 128)))
    P["af1_1"] = af_params(kg, 64, 64, 32);    P["af1_2"] = af_params(kg, 64, 64, 32)
    P["af2_1"] = af_params(kg, 128, 128, 64);  P["af2_2"] = af_params(kg, 128, 128, 64)
    P["af3_1"] = af_params(kg, 256, 256, 128); P["af3_2"] = af_params(kg, 256, 256, 128)
    P["af4"] = af_params(kg, 448, 448, 224)
    P["backbone"] = dict(w3=make_blk(kg, 4 * 64, 128),
                         w4=make_blk(kg, 128 * 4, 256),
                         w5=make_blk(kg, 256 * 4, 512))
    P["img1"] = make_blk(kg, 128, 64)
    P["img2"] = make_blk(kg, 256, 128)
    P["img3"] = make_blk(kg, 512, 256)
    P["coord_conv"] = make_blk(kg, 224, 64); P["coord_pt"] = gva_params(kg, 64, 8)
    P["norm_conv"] = make_blk(kg, 224, 64);  P["norm_pt"] = gva_params(kg, 64, 8)
    P["pts_conv1"] = make_blk(kg, 448, 256); P["pts_pt1"] = gva_params(kg, 256, 16)
    P["pts_conv2"] = make_blk(kg, 256, 128); P["pts_pt2"] = gva_params(kg, 128, 16)
    P["seg1"] = make_blk(kg, 256, 128)
    P["seg2"] = make_blk(kg, 128, 64)
    P["seg3"] = dict(w=glorot(kg(), (64, num_classes)))
    return P


# ----------------------------------------------------------------------------
# full forward pass
# ----------------------------------------------------------------------------
def tfusenet_forward(P, x, images, k=8):
    b, C, n = x.shape                                          # C = 24
    _, n_img, ci, h, w = images.shape

    xl = jnp.transpose(x, (0, 2, 1))                           # (b, n, 24)
    p0 = xl[..., :3].reshape(b * n, 3)
    x0 = xl.reshape(b * n, C)

    # per-batch kNN for patch_embed / encoders; global kNN for late PTv2 layers
    nbr = knn_idx(xl[..., :3], k)
    ref_idx = (nbr + (jnp.arange(b) * n)[:, None, None]).reshape(b * n, k)
    ref_idx_g = knn_idx(p0[None], k)[0]

    # GVAPatchEmbed (projection + grouped vector attention)
    feat = pw_blk(x0, P["pe_proj"], act="relu")
    feat = feat + gva_layer(P["pe_gva"], p0, feat, ref_idx)

    # STN branches (coord / norm, 12 channels each)
    coord = apply_stn(P["stn_c"], xl[..., :12])                # (b, n, 12)
    norm = apply_stn(P["stn_n"], xl[..., 12:])                 # (b, n, 12)

    # image stream (NHWC end-to-end)
    imgs = jnp.transpose(images.reshape(b * n_img, ci, h, w), (0, 2, 3, 1))
    f3, f4, f5 = fake_backbone(P["backbone"], imgs)
    img1 = conv2d_pw_nhwc(f3, P["img1"])
    img2 = conv2d_pw_nhwc(f4, P["img2"])
    img3 = conv2d_pw_nhwc(f5, P["img3"])

    def view_max(f):
        bb, hh, ww, cc = f.shape
        return f.reshape(b, n_img, hh, ww, cc).max(axis=1)

    imf = [view_max(img1), view_max(img2), view_max(img3)]
    img_skip = [jnp.mean(f.astype(jnp.float32), axis=(1, 2)) for f in imf]
    img_feats = [f.reshape(b, -1, f.shape[-1]) for f in imf]

    # ===== level 1 =====
    edge_c, edge_n = get_graph_feature_pair(coord, norm, k)
    coord1 = graph_attention(P["conv1_c"], P["gatt1"]["w"], edge_c)   # (b,n,32)
    norm1 = conv_edge_max(edge_n, P["conv1_n"])                       # (b,n,32)

    feat1 = pt_encoder(P["enc1"], p0, feat, ref_idx)                  # (b*n,64)
    pf = feat1.reshape(b, n, 64)
    pf = attention_fusion(P["af1_1"], img_feats[0], pf)
    cn1 = jnp.concatenate([coord1, norm1], axis=-1)
    pf = attention_fusion(P["af1_2"], cn1, pf)
    feat1 = pf.reshape(b * n, 64)

    # ===== level 2 =====
    edge_c, edge_n = get_graph_feature_pair(coord1, norm1, k)
    coord2 = graph_attention(P["conv2_c"], P["gatt2"]["w"], edge_c)   # (b,n,64)
    norm2 = conv_edge_max(edge_n, P["conv2_n"])

    feat2 = pt_encoder(P["enc2"], p0, feat1, ref_idx)                 # (b*n,128)
    pf = feat2.reshape(b, n, 128)
    pf = attention_fusion(P["af2_1"], img_feats[1], pf)
    cn2 = jnp.concatenate([coord2, norm2], axis=-1)
    pf = attention_fusion(P["af2_2"], cn2, pf)
    feat2 = pf.reshape(b * n, 128)

    # ===== level 3 =====
    edge_c, edge_n = get_graph_feature_pair(coord2, norm2, k)
    coord3 = graph_attention(P["conv3_c"], P["gatt3"]["w"], edge_c)   # (b,n,128)
    norm3 = conv_edge_max(edge_n, P["conv3_n"])

    feat3 = pt_encoder(P["enc3"], p0, feat2, ref_idx)                 # (b*n,256)
    pf = feat3.reshape(b, n, 256)
    pf = attention_fusion(P["af3_1"], img_feats[2], pf)
    cn3 = jnp.concatenate([coord3, norm3], axis=-1)
    pf = attention_fusion(P["af3_2"], cn3, pf)
    feat3 = pf.reshape(b * n, 256)

    # ===== global fusion =====
    coord_cat = jnp.concatenate([coord3, coord2, coord1], axis=-1)    # (b,n,224)
    norm_cat = jnp.concatenate([norm3, norm2, norm1], axis=-1)        # (b,n,224)
    img_cat = jnp.concatenate(img_skip, axis=-1)                      # (b,448)
    img_rep = jnp.broadcast_to(img_cat[:, None, :], (b, n, img_cat.shape[-1]))
    cn4 = jnp.concatenate([coord_cat, norm_cat], axis=-1)             # (b,n,448)
    cn4 = attention_fusion(P["af4"], img_rep, cn4)
    coord_f, norm_f = cn4[..., :224], cn4[..., 224:]

    cfeat = pw_blk(coord_f.reshape(b * n, 224), P["coord_conv"])
    cfeat = gva_layer(P["coord_pt"], p0, cfeat, ref_idx_g)            # (b*n,64)

    nfeat = pw_blk(norm_f.reshape(b * n, 224), P["norm_conv"])
    nfeat = gva_layer(P["norm_pt"], p0, nfeat, ref_idx_g)             # (b*n,64)

    pts = jnp.concatenate([feat3, feat2, feat1], axis=-1)             # (b*n,448)
    pts = pw_blk(pts, P["pts_conv1"])
    pts = gva_layer(P["pts_pt1"], p0, pts, ref_idx_g)
    pts = pw_blk(pts, P["pts_conv2"])
    pts = gva_layer(P["pts_pt2"], p0, pts, ref_idx_g)                 # (b*n,128)

    feats = jnp.concatenate([pts, cfeat, nfeat], axis=-1)             # (b*n,256)

    # fused segmentation head (Dropout is identity in eval mode)
    num_classes = P["seg3"]["w"].shape[1]
    seg_layers = [_fold(P["seg1"]), _fold(P["seg2"]),
                  (P["seg3"]["w"].astype(jnp.bfloat16),
                   jnp.zeros((1, num_classes), jnp.float32))]
    rows = fused_mlp(feats, seg_layers, ("leaky", "leaky", "none"),
                     out_dtype=jnp.float32, pad_out_lanes=True)
    return rows.reshape(b, n, num_classes)


# ----------------------------------------------------------------------------
if __name__ == "__main__":
    b, n, n_img, h, w, k, num_classes = 2, 64, 2, 32, 32, 8, 17
    key = jax.random.PRNGKey(0)
    kx, ki = jax.random.split(key)
    x = jax.random.normal(kx, (b, 24, n), jnp.float32)
    images = jax.random.normal(ki, (b, n_img, 4, h, w), jnp.float32)

    params = make_params(seed=0, num_classes=num_classes)
    out = tfusenet_forward(params, x, images, k=k)
    out = jax.block_until_ready(out)
    assert out.shape == (b, n, num_classes)
    assert jnp.all(jnp.isfinite(out))
    print("KERNEL_OK")
</pallas_src>

<mosaic_0001>
module attributes {stable_mosaic.version = 11 : i64} {
  func.func @_knn_kernel(%arg0: i32, %arg1: i32, %arg2: i32, %arg3: memref<1x64x3xf32, #tpu.memory_space<vmem>>, %arg4: memref<1x64x3xf32, #tpu.memory_space<vmem>>, %arg5: memref<1x1x64xf32, #tpu.memory_space<vmem>>, %arg6: memref<1x64x8xi32, #tpu.memory_space<vmem>>, %arg7: memref<64x8xf32, #tpu.memory_space<vmem>>, %arg8: memref<64x8xi32, #tpu.memory_space<vmem>>) attributes {dimension_semantics = [#tpu.dimension_semantics<parallel>, #tpu.dimension_semantics<parallel>, #tpu.dimension_semantics<arbitrary>], iteration_bounds = array<i64: 2, 1, 1>, scalar_prefetch = 0 : i64, scratch_operands = 2 : i64, tpu.core_type = #tpu.core_type<tc>, window_params = [{transform_indices = @transform_0, window_bounds = array<i64: 1, 64, 3>}, {transform_indices = @transform_1, window_bounds = array<i64: 1, 64, 3>}, {transform_indices = @transform_2, window_bounds = array<i64: 1, 1, 64>}, {transform_indices = @transform_3, window_bounds = array<i64: 1, 64, 8>}]} {
    %c0_i32 = arith.constant 0 : i32
    %0 = arith.cmpi eq, %arg2, %c0_i32 : i32
    %1 = arith.extui %0 : i1 to i32
    %c0_i32_0 = arith.constant 0 : i32
    %2 = arith.cmpi ne, %1, %c0_i32_0 : i32
    scf.if %2 {
      %cst_52 = arith.constant 0x7F800000 : f32
      %125 = vector.broadcast %cst_52 : f32 to vector<64x8xf32>
      %c0_53 = arith.constant 0 : index
      %c0_54 = arith.constant 0 : index
      %126 = vector.load %arg7[%c0_53, %c0_54] : memref<64x8xf32, #tpu.memory_space<vmem>>, vector<64x8xf32>
      tpu.vector_store %arg7[%c0_53, %c0_54], %125 {strides = array<i32>} : memref<64x8xf32, #tpu.memory_space<vmem>>, vector<64x8xf32>,
      %c-1_i32 = arith.constant -1 : i32
      %127 = vector.broadcast %c-1_i32 : i32 to vector<64x8xi32>
      %c0_55 = arith.constant 0 : index
      %c0_56 = arith.constant 0 : index
      %128 = vector.load %arg8[%c0_55, %c0_56] : memref<64x8xi32, #tpu.memory_space<vmem>>, vector<64x8xi32>
      tpu.vector_store %arg8[%c0_55, %c0_56], %127 {strides = array<i32>} : memref<64x8xi32, #tpu.memory_space<vmem>>, vector<64x8xi32>,
    } else {
    }
    %c0 = arith.constant 0 : index
    %c0_1 = arith.constant 0 : index
    %c0_2 = arith.constant 0 : index
    %3 = vector.load %arg3[%c0, %c0_1, %c0_2] : memref<1x64x3xf32, #tpu.memory_space<vmem>>, vector<1x64x3xf32>
    %4 = vector.shape_cast %3 : vector<1x64x3xf32> to vector<64x3xf32>
    %c0_3 = arith.constant 0 : index
    %c0_4 = arith.constant 0 : index
    %c0_5 = arith.constant 0 : index
    %5 = vector.load %arg4[%c0_3, %c0_4, %c0_5] : memref<1x64x3xf32, #tpu.memory_space<vmem>>, vector<1x64x3xf32>
    %6 = vector.shape_cast %5 : vector<1x64x3xf32> to vector<64x3xf32>
    %cst = arith.constant dense<0.000000e+00> : vector<64x64xf32>
    %7 = tpu.matmul %4, %6, %cst {dimension_numbers = #tpu.dot_dimension_numbers<[1], [1], [0], [0], [0, 0, 1, 0], [], []>} : vector<64x3xf32>, vector<64x3xf32>, vector<64x64xf32> -> vector<64x64xf32>
    %c0_6 = arith.constant 0 : index
    %c0_7 = arith.constant 0 : index
    %c0_8 = arith.constant 0 : index
    %8 = vector.load %arg5[%c0_6, %c0_7, %c0_8] : memref<1x1x64xf32, #tpu.memory_space<vmem>>, vector<1x1x64xf32>
    %9 = vector.shape_cast %8 : vector<1x1x64xf32> to vector<1x64xf32>
    %cst_9 = arith.constant 2.000000e+00 : f32
    %10 = vector.broadcast %cst_9 : f32 to vector<64x64xf32>
    %11 = arith.mulf %10, %7 : vector<64x64xf32>
    %12 = vector.broadcast %9 : vector<1x64xf32> to vector<64x64xf32>
    %13 = arith.subf %12, %11 : vector<64x64xf32>
    %c64_i32 = arith.constant 64 : i32
    %14 = arith.muli %arg2, %c64_i32 : i32
    %15 = tpu.iota {dimensions = array<i32: 1>} : vector<64x64xi32>
    %16 = vector.broadcast %14 : i32 to vector<64x64xi32>
    %17 = arith.addi %16, %15 : vector<64x64xi32>
    %c64_i32_10 = arith.constant 64 : i32
    %18 = vector.broadcast %c64_i32_10 : i32 to vector<64x64xi32>
    %19 = arith.cmpi slt, %17, %18 : vector<64x64xi32>
    %cst_11 = arith.constant 0x7F800000 : f32
    %20 = vector.broadcast %cst_11 : f32 to vector<64x64xf32>
    %21 = arith.select %19, %13, %20 : vector<64x64xi1>, vector<64x64xf32>
    %c0_12 = arith.constant 0 : index
    %c0_13 = arith.constant 0 : index
    %22 = vector.load %arg7[%c0_12, %c0_13] : memref<64x8xf32, #tpu.memory_space<vmem>>, vector<64x8xf32>
    %23 = tpu.concatenate %22, %21 in 1 : vector<64x8xf32>, vector<64x64xf32> -> vector<64x72xf32>
    %c0_14 = arith.constant 0 : index
    %c0_15 = arith.constant 0 : index
    %24 = vector.load %arg8[%c0_14, %c0_15] : memref<64x8xi32, #tpu.memory_space<vmem>>, vector<64x8xi32>
    %25 = tpu.concatenate %24, %17 in 1 : vector<64x8xi32>, vector<64x64xi32> -> vector<64x72xi32>
    %cst_16 = arith.constant dense<0x7F800000> : vector<64xf32>
    %26 = vector.multi_reduction <minimumf>, %23, %cst_16 [1] : vector<64x72xf32> to vector<64xf32>
    %27 = vector.shape_cast %26 : vector<64xf32> to vector<64x1xf32>
    %28 = vector.broadcast %27 : vector<64x1xf32> to vector<64x72xf32>
    %29 = arith.cmpf oeq, %23, %28 : vector<64x72xf32>
    %c2147483647_i32 = arith.constant 2147483647 : i32
    %30 = vector.broadcast %c2147483647_i32 : i32 to vector<64x72xi32>
    %31 = arith.select %29, %25, %30 : vector<64x72xi1>, vector<64x72xi32>
    %cst_17 = arith.constant dense<2147483647> : vector<64xi32>
    %32 = vector.multi_reduction <minsi>, %31, %cst_17 [1] : vector<64x72xi32> to vector<64xi32>
    %33 = vector.shape_cast %32 : vector<64xi32> to vector<64x1xi32>
    %34 = vector.broadcast %33 : vector<64x1xi32> to vector<64x72xi32>
    %35 = arith.cmpi eq, %25, %34 : vector<64x72xi32>
    %cst_18 = arith.constant 0x7F800000 : f32
    %36 = vector.broadcast %cst_18 : f32 to vector<64x72xf32>
    %37 = arith.select %35, %36, %23 : vector<64x72xi1>, vector<64x72xf32>
    %cst_19 = arith.constant dense<0x7F800000> : vector<64xf32>
    %38 = vector.multi_reduction <minimumf>, %37, %cst_19 [1] : vector<64x72xf32> to vector<64xf32>
    %39 = vector.shape_cast %38 : vector<64xf32> to vector<64x1xf32>
    %40 = vector.broadcast %39 : vector<64x1xf32> to vector<64x72xf32>
    %41 = arith.cmpf oeq, %37, %40 : vector<64x72xf32>
    %c2147483647_i32_20 = arith.constant 2147483647 : i32
    %42 = vector.broadcast %c2147483647_i32_20 : i32 to vector<64x72xi32>
    %43 = arith.select %41, %25, %42 : vector<64x72xi1>, vector<64x72xi32>
    %cst_21 = arith.constant dense<2147483647> : vector<64xi32>
    %44 = vector.multi_reduction <minsi>, %43, %cst_21 [1] : vector<64x72xi32> to vector<64xi32>
    %45 = vector.shape_cast %44 : vector<64xi32> to vector<64x1xi32>
    %46 = vector.broadcast %45 : vector<64x1xi32> to vector<64x72xi32>
    %47 = arith.cmpi eq, %25, %46 : vector<64x72xi32>
    %cst_22 = arith.constant 0x7F800000 : f32
    %48 = vector.broadcast %cst_22 : f32 to vector<64x72xf32>
    %49 = arith.select %47, %48, %37 : vector<64x72xi1>, vector<64x72xf32>
    %cst_23 = arith.constant dense<0x7F800000> : vector<64xf32>
    %50 = vector.multi_reduction <minimumf>, %49, %cst_23 [1] : vector<64x72xf32> to vector<64xf32>
    %51 = vector.shape_cast %50 : vector<64xf32> to vector<64x1xf32>
    %52 = vector.broadcast %51 : vector<64x1xf32> to vector<64x72xf32>
    %53 = arith.cmpf oeq, %49, %52 : vector<64x72xf32>
    %c2147483647_i32_24 = arith.constant 2147483647 : i32
    %54 = vector.broadcast %c2147483647_i32_24 : i32 to vector<64x72xi32>
    %55 = arith.select %53, %25, %54 : vector<64x72xi1>, vector<64x72xi32>
    %cst_25 = arith.constant dense<2147483647> : vector<64xi32>
    %56 = vector.multi_reduction <minsi>, %55, %cst_25 [1] : vector<64x72xi32> to vector<64xi32>
    %57 = vector.shape_cast %56 : vector<64xi32> to vector<64x1xi32>
    %58 = vector.broadcast %57 : vector<64x1xi32> to vector<64x72xi32>
    %59 = arith.cmpi eq, %25, %58 : vector<64x72xi32>
    %cst_26 = arith.constant 0x7F800000 : f32
    %60 = vector.broadcast %cst_26 : f32 to vector<64x72xf32>
    %61 = arith.select %59, %60, %49 : vector<64x72xi1>, vector<64x72xf32>
    %cst_27 = arith.constant dense<0x7F800000> : vector<64xf32>
    %62 = vector.multi_reduction <minimumf>, %61, %cst_27 [1] : vector<64x72xf32> to vector<64xf32>
    %63 = vector.shape_cast %62 : vector<64xf32> to vector<64x1xf32>
    %64 = vector.broadcast %63 : vector<64x1xf32> to vector<64x72xf32>
    %65 = arith.cmpf oeq, %61, %64 : vector<64x72xf32>
    %c2147483647_i32_28 = arith.constant 2147483647 : i32
    %66 = vector.broadcast %c2147483647_i32_28 : i32 to vector<64x72xi32>
    %67 = arith.select %65, %25, %66 : vector<64x72xi1>, vector<64x72xi32>
    %cst_29 = arith.constant dense<2147483647> : vector<64xi32>
    %68 = vector.multi_reduction <minsi>, %67, %cst_29 [1] : vector<64x72xi32> to vector<64xi32>
    %69 = vector.shape_cast %68 : vector<64xi32> to vector<64x1xi32>
    %70 = vector.broadcast %69 : vector<64x1xi32> to vector<64x72xi32>
    %71 = arith.cmpi eq, %25, %70 : vector<64x72xi32>
    %cst_30 = arith.constant 0x7F800000 : f32
    %72 = vector.broadcast %cst_30 : f32 to vector<64x72xf32>
    %73 = arith.select %71, %72, %61 : vector<64x72xi1>, vector<64x72xf32>
    %cst_31 = arith.constant dense<0x7F800000> : vector<64xf32>
    %74 = vector.multi_reduction <minimumf>, %73, %cst_31 [1] : vector<64x72xf32> to vector<64xf32>
    %75 = vector.shape_cast %74 : vector<64xf32> to vector<64x1xf32>
    %76 = vector.broadcast %75 : vector<64x1xf32> to vector<64x72xf32>
    %77 = arith.cmpf oeq, %73, %76 : vector<64x72xf32>
    %c2147483647_i32_32 = arith.constant 2147483647 : i32
    %78 = vector.broadcast %c2147483647_i32_32 : i32 to vector<64x72xi32>
    %79 = arith.select %77, %25, %78 : vector<64x72xi1>, vector<64x72xi32>
    %cst_33 = arith.constant dense<2147483647> : vector<64xi32>
    %80 = vector.multi_reduction <minsi>, %79, %cst_33 [1] : vector<64x72xi32> to vector<64xi32>
    %81 = vector.shape_cast %80 : vector<64xi32> to vector<64x1xi32>
    %82 = vector.broadcast %81 : vector<64x1xi32> to vector<64x72xi32>
    %83 = arith.cmpi eq, %25, %82 : vector<64x72xi32>
    %cst_34 = arith.constant 0x7F800000 : f32
    %84 = vector.broadcast %cst_34 : f32 to vector<64x72xf32>
    %85 = arith.select %83, %84, %73 : vector<64x72xi1>, vector<64x72xf32>
    %cst_35 = arith.constant dense<0x7F800000> : vector<64xf32>
    %86 = vector.multi_reduction <minimumf>, %85, %cst_35 [1] : vector<64x72xf32> to vector<64xf32>
    %87 = vector.shape_cast %86 : vector<64xf32> to vector<64x1xf32>
    %88 = vector.broadcast %87 : vector<64x1xf32> to vector<64x72xf32>
    %89 = arith.cmpf oeq, %85, %88 : vector<64x72xf32>
    %c2147483647_i32_36 = arith.constant 2147483647 : i32
    %90 = vector.broadcast %c2147483647_i32_36 : i32 to vector<64x72xi32>
    %91 = arith.select %89, %25, %90 : vector<64x72xi1>, vector<64x72xi32>
    %cst_37 = arith.constant dense<2147483647> : vector<64xi32>
    %92 = vector.multi_reduction <minsi>, %91, %cst_37 [1] : vector<64x72xi32> to vector<64xi32>
    %93 = vector.shape_cast %92 : vector<64xi32> to vector<64x1xi32>
    %94 = vector.broadcast %93 : vector<64x1xi32> to vector<64x72xi32>
    %95 = arith.cmpi eq, %25, %94 : vector<64x72xi32>
    %cst_38 = arith.constant 0x7F800000 : f32
    %96 = vector.broadcast %cst_38 : f32 to vector<64x72xf32>
    %97 = arith.select %95, %96, %85 : vector<64x72xi1>, vector<64x72xf32>
    %cst_39 = arith.constant dense<0x7F800000> : vector<64xf32>
    %98 = vector.multi_reduction <minimumf>, %97, %cst_39 [1] : vector<64x72xf32> to vector<64xf32>
    %99 = vector.shape_cast %98 : vector<64xf32> to vector<64x1xf32>
    %100 = vector.broadcast %99 : vector<64x1xf32> to vector<64x72xf32>
    %101 = arith.cmpf oeq, %97, %100 : vector<64x72xf32>
    %c2147483647_i32_40 = arith.constant 2147483647 : i32
    %102 = vector.broadcast %c2147483647_i32_40 : i32 to vector<64x72xi32>
    %103 = arith.select %101, %25, %102 : vector<64x72xi1>, vector<64x72xi32>
    %cst_41 = arith.constant dense<2147483647> : vector<64xi32>
    %104 = vector.multi_reduction <minsi>, %103, %cst_41 [1] : vector<64x72xi32> to vector<64xi32>
    %105 = vector.shape_cast %104 : vector<64xi32> to vector<64x1xi32>
    %106 = vector.broadcast %105 : vector<64x1xi32> to vector<64x72xi32>
    %107 = arith.cmpi eq, %25, %106 : vector<64x72xi32>
    %cst_42 = arith.constant 0x7F800000 : f32
    %108 = vector.broadcast %cst_42 : f32 to vector<64x72xf32>
    %109 = arith.select %107, %108, %97 : vector<64x72xi1>, vector<64x72xf32>
    %cst_43 = arith.constant dense<0x7F800000> : vector<64xf32>
    %110 = vector.multi_reduction <minimumf>, %109, %cst_43 [1] : vector<64x72xf32> to vector<64xf32>
    %111 = vector.shape_cast %110 : vector<64xf32> to vector<64x1xf32>
    %112 = vector.broadcast %111 : vector<64x1xf32> to vector<64x72xf32>
    %113 = arith.cmpf oeq, %109, %112 : vector<64x72xf32>
    %c2147483647_i32_44 = arith.constant 2147483647 : i32
    %114 = vector.broadcast %c2147483647_i32_44 : i32 to vector<64x72xi32>
    %115 = arith.select %113, %25, %114 : vector<64x72xi1>, vector<64x72xi32>
    %cst_45 = arith.constant dense<2147483647> : vector<64xi32>
    %116 = vector.multi_reduction <minsi>, %115, %cst_45 [1] : vector<64x72xi32> to vector<64xi32>
    %117 = vector.shape_cast %116 : vector<64xi32> to vector<64x1xi32>
    %118 = tpu.concatenate %27, %39, %51, %63, %75, %87, %99, %111 in 1 : vector<64x1xf32>, vector<64x1xf32>, vector<64x1xf32>, vector<64x1xf32>, vector<64x1xf32>, vector<64x1xf32>, vector<64x1xf32>, vector<64x1xf32> -> vector<64x8xf32>
    %c0_46 = arith.constant 0 : index
    %c0_47 = arith.constant 0 : index
    %119 = vector.load %arg7[%c0_46, %c0_47] : memref<64x8xf32, #tpu.memory_space<vmem>>, vector<64x8xf32>
    tpu.vector_store %arg7[%c0_46, %c0_47], %118 {strides = array<i32>} : memref<64x8xf32, #tpu.memory_space<vmem>>, vector<64x8xf32>,
    %120 = tpu.concatenate %33, %45, %57, %69, %81, %93, %105, %117 in 1 : vector<64x1xi32>, vector<64x1xi32>, vector<64x1xi32>, vector<64x1xi32>, vector<64x1xi32>, vector<64x1xi32>, vector<64x1xi32>, vector<64x1xi32> -> vector<64x8xi32>
    %c0_48 = arith.constant 0 : index
    %c0_49 = arith.constant 0 : index
    %121 = vector.load %arg8[%c0_48, %c0_49] : memref<64x8xi32, #tpu.memory_space<vmem>>, vector<64x8xi32>
    tpu.vector_store %arg8[%c0_48, %c0_49], %120 {strides = array<i32>} : memref<64x8xi32, #tpu.memory_space<vmem>>, vector<64x8xi32>,
    %c0_i32_50 = arith.constant 0 : i32
    %122 = arith.cmpi eq, %arg2, %c0_i32_50 : i32
    %123 = arith.extui %122 : i1 to i32
    %c0_i32_51 = arith.constant 0 : i32
    %124 = arith.cmpi ne, %123, %c0_i32_51 : i32
    scf.if %124 {
      %c0_52 = arith.constant 0 : index
      %c0_53 = arith.constant 0 : index
      %125 = vector.load %arg8[%c0_52, %c0_53] : memref<64x8xi32, #tpu.memory_space<vmem>>, vector<64x8xi32>
      %c0_54 = arith.constant 0 : index
      %c0_55 = arith.constant 0 : index
      %c0_56 = arith.constant 0 : index
      %126 = vector.load %arg6[%c0_54, %c0_55, %c0_56] : memref<1x64x8xi32, #tpu.memory_space<vmem>>, vector<1x64x8xi32>
      %127 = vector.shape_cast %126 : vector<1x64x8xi32> to vector<64x8xi32>
      %128 = vector.shape_cast %125 : vector<64x8xi32> to vector<1x64x8xi32>
      tpu.vector_store %arg6[%c0_54, %c0_55, %c0_56], %128 {strides = array<i32>} : memref<1x64x8xi32, #tpu.memory_space<vmem>>, vector<1x64x8xi32>,
    } else {
    }
    return
  }
  func.func @transform_0(%arg0: i32, %arg1: i32, %arg2: i32) -> (i32, i32, i32) {
    %c0_i32 = arith.constant 0 : i32
    %c0_i32_0 = arith.constant 0 : i32
    return %arg0, %arg1, %c0_i32 : i32, i32, i32
  }
  func.func @transform_1(%arg0: i32, %arg1: i32, %arg2: i32) -> (i32, i32, i32) {
    %c0_i32 = arith.constant 0 : i32
    %c0_i32_0 = arith.constant 0 : i32
    return %arg0, %arg2, %c0_i32 : i32, i32, i32
  }
  func.func @transform_2(%arg0: i32, %arg1: i32, %arg2: i32) -> (i32, i32, i32) {
    %c0_i32 = arith.constant 0 : i32
    %c0_i32_0 = arith.constant 0 : i32
    return %arg0, %c0_i32, %arg2 : i32, i32, i32
  }
  func.func @transform_3(%arg0: i32, %arg1: i32, %arg2: i32) -> (i32, i32, i32) {
    %c0_i32 = arith.constant 0 : i32
    %c0_i32_0 = arith.constant 0 : i32
    return %arg0, %arg1, %c0_i32 : i32, i32, i32
  }
}

</mosaic_0001>

<llo_original>
// kernel: tpu_custom_call.1
$region0: #{tpu_custom_call.1}
  #allocation0 [shape = 'u32[]', space=smem, size = 0x4, offset = 0x4, fixed_abs, tag = 'smem constant byte address 0x4 - core index']
  #allocation1 [shape = 'u32[144,128]{1,0:T(1,128)}', space=vmem, size = 0x12000, scoped, tag = 'internal scratch']
  #allocation2 [shape = 'f32[64,8]{1,0:T(8,128)}', space=vmem, size = 0x8000, scoped, tag = 'scratch operand']
  #allocation3 [shape = 's32[64,8]{1,0:T(8,128)}', space=vmem, size = 0x8000, scoped, tag = 'scratch operand']
  %s0 = inlined_call_operand.vmem [shape: f32[2,64,3], index: 0, kind: input, shape index: {}]
  %s1 = inlined_call_operand.vmem [shape: f32[2,64,3], index: 1, kind: input, shape index: {}]
  %s2 = inlined_call_operand.vmem [shape: f32[2,1,64], index: 2, kind: input, shape index: {}]
  %s3 = inlined_call_operand.vmem [shape: s32[2,64,8], index: 3, kind: output, shape index: {}]
  %s4 = sld [smem:[#allocation0]]
  $region53: #{tpu_custom_call.1} parent=0
    _
  %s6 = ssub.s32 1, %s4
  %s7 = scalar_select 0, %s6, %s4
  loop: start=0, step=1, limit=4
  $region2: #{tpu_custom_call.1} parent=0 // loop_pre_header
    _
  $region3: #{tpu_custom_call.1} parent=0 // loop_header
    %s9 = sphi 0, %s13
    %p10 = scmp.ge.s32.totalorder %s9, 4
    %s16 = sphi 0, %s35
    %s17 = sphi 0, %s31
    %s18 = sphi 0, %s27
    %s19 = sphi 0, %s16
    %s20 = sphi 0, %s17
    %s21 = sphi 0, %s18
    %s22 = sphi 0, %s19
    %s23 = sphi 0, %s20
    %s24 = sphi 0, %s21
    %s40 = sphi 0, %s42
    %s43 = sphi 0, %s40
    %s44 = sphi 0, %s43
    %s60 = sphi 0, %s44
    %s68 = sphi 0, %s70
    %s71 = sphi 0, %s68
    %s72 = sphi 0, %s71
    %s88 = sphi 0, %s72
    %s96 = sphi 0, %s98
    %s99 = sphi 0, %s96
    %s100 = sphi 0, %s99
    %s116 = sphi 0, %s100
    %s124 = sphi 0, %s126
    %s127 = sphi 0, %s124
    %s128 = sphi 0, %s127
    %s144 = sphi 0, %s128
  $region4: #{tpu_custom_call.1} parent=0 // loop_header_branch
    %12 = sbr.rel (%p10) target = $region8
  $region5: #{tpu_custom_call.1} parent=0 // loop_body
    %s14 = ssub.s32 %s9, 1
    %s15 = ssub.s32 %s9, 2
    %s25 = sadd.s32 1, %s18
    %p26 = scmp.ge.s32.totalorder %s25, 1
    %s27 = scalar_select %p26, 0, %s25
    %s28 = sadd.s32 1, %s17
    %s29 = scalar_select %p26, %s28, %s17
    %p30 = scmp.ge.s32.totalorder %s29, 1
    %s31 = scalar_select %p30, 0, %s29
    %s32 = sadd.s32 1, %s16
    %s33 = scalar_select %p30, %s32, %s16
    %p34 = scmp.ge.s32.totalorder %s33, 2
    %s35 = scalar_select %p34, 0, %s33
    %s36 = ssub.s32 %s16, %s35
    %s37 = ssub.s32 %s17, %s31
    %s38 = sor.u32 %s36, %s37
    %p39 = scmp.eq.s32.totalorder %s38, 0
    %s41 = sadd.s32 %s40, 1
    %s42 = scalar_select %p39, %s40, %s41
    %p45 = pneg %p39
    %p46 = scmp.eq.s32.totalorder %s9, 1
    %p47 = por %p45, %p46
    %p48 = scmp.ne.s32.totalorder %s40, %s43
    %p49 = scmp.eq.s32.totalorder %s9, 0
    %p50 = por %p48, %p49
    %p51 = scmp.ne.s32.totalorder %s40, %s43
    %p52 = scmp.eq.s32.totalorder %s14, 1
    %p53 = por %p51, %p52
    %p54 = scmp.ne.s32.totalorder %s43, %s44
    %p55 = scmp.eq.s32.totalorder %s14, 0
    %p56 = por %p54, %p55
    %p57 = scmp.ne.s32.totalorder %s43, %s44
    %p58 = scmp.eq.s32.totalorder %s15, 1
    %p59 = por %p57, %p58
    %p61 = scmp.ne.s32.totalorder %s44, %s60
    %p62 = scmp.eq.s32.totalorder %s15, 0
    %p63 = por %p61, %p62
    %s64 = ssub.s32 %s16, %s35
    %s65 = ssub.s32 %s18, %s27
    %s66 = sor.u32 %s64, %s65
    %p67 = scmp.eq.s32.totalorder %s66, 0
    %s69 = sadd.s32 %s68, 1
    %s70 = scalar_select %p67, %s68, %s69
    %p73 = pneg %p67
    %p74 = scmp.eq.s32.totalorder %s9, 1
    %p75 = por %p73, %p74
    %p76 = scmp.ne.s32.totalorder %s68, %s71
    %p77 = scmp.eq.s32.totalorder %s9, 0
    %p78 = por %p76, %p77
    %p79 = scmp.ne.s32.totalorder %s68, %s71
    %p80 = scmp.eq.s32.totalorder %s14, 1
    %p81 = por %p79, %p80
    %p82 = scmp.ne.s32.totalorder %s71, %s72
    %p83 = scmp.eq.s32.totalorder %s14, 0
    %p84 = por %p82, %p83
    %p85 = scmp.ne.s32.totalorder %s71, %s72
    %p86 = scmp.eq.s32.totalorder %s15, 1
    %p87 = por %p85, %p86
    %p89 = scmp.ne.s32.totalorder %s72, %s88
    %p90 = scmp.eq.s32.totalorder %s15, 0
    %p91 = por %p89, %p90
    %s92 = ssub.s32 %s16, %s35
    %s93 = ssub.s32 %s18, %s27
    %s94 = sor.u32 %s92, %s93
    %p95 = scmp.eq.s32.totalorder %s94, 0
    %s97 = sadd.s32 %s96, 1
    %s98 = scalar_select %p95, %s96, %s97
    %p101 = pneg %p95
    %p102 = scmp.eq.s32.totalorder %s9, 1
    %p103 = por %p101, %p102
    %p104 = scmp.ne.s32.totalorder %s96, %s99
    %p105 = scmp.eq.s32.totalorder %s9, 0
    %p106 = por %p104, %p105
    %p107 = scmp.ne.s32.totalorder %s96, %s99
    %p108 = scmp.eq.s32.totalorder %s14, 1
    %p109 = por %p107, %p108
    %p110 = scmp.ne.s32.totalorder %s99, %s100
    %p111 = scmp.eq.s32.totalorder %s14, 0
    %p112 = por %p110, %p111
    %p113 = scmp.ne.s32.totalorder %s99, %s100
    %p114 = scmp.eq.s32.totalorder %s15, 1
    %p115 = por %p113, %p114
    %p117 = scmp.ne.s32.totalorder %s100, %s116
    %p118 = scmp.eq.s32.totalorder %s15, 0
    %p119 = por %p117, %p118
    %s120 = ssub.s32 %s16, %s35
    %s121 = ssub.s32 %s17, %s31
    %s122 = sor.u32 %s120, %s121
    %p123 = scmp.eq.s32.totalorder %s122, 0
    %s125 = sadd.s32 %s124, 1
    %s126 = scalar_select %p123, %s124, %s125
    %p129 = pneg %p123
    %p130 = scmp.eq.s32.totalorder %s9, 1
    %p131 = por %p129, %p130
    %p132 = scmp.ne.s32.totalorder %s124, %s127
    %p133 = scmp.eq.s32.totalorder %s9, 0
    %p134 = por %p132, %p133
    %p135 = scmp.ne.s32.totalorder %s124, %s127
    %p136 = scmp.eq.s32.totalorder %s14, 1
    %p137 = por %p135, %p136
    %p138 = scmp.ne.s32.totalorder %s127, %s128
    %p139 = scmp.eq.s32.totalorder %s14, 0
    %p140 = por %p138, %p139
    %p141 = scmp.ne.s32.totalorder %s127, %s128
    %p142 = scmp.eq.s32.totalorder %s15, 1
    %p143 = por %p141, %p142
    %p145 = scmp.ne.s32.totalorder %s128, %s144
    %p146 = scmp.eq.s32.totalorder %s15, 0
    %p147 = por %p145, %p146
    %p148 = scmp.le.s32.totalorder 1, %s9
    %p149 = scmp.lt.s32.totalorder %s9, 3
    %p150 = pnand %p148, %p149
    %p151 = pneg %p150
    // Predicated region
    $region9: #{tpu_custom_call.1} parent=5 // pred_check
      _
    $region10: #{tpu_custom_call.1} parent=5 // pred_check_branch
      %153 = sbr.rel (%p150) target = $region12
    $region11: #{tpu_custom_call.1} parent=5 // pred_region
      %s154 = ssub.s32 %s9, 1
    $region12: #{tpu_custom_call.1} parent=5 // pred_fallthru
      _
    %p155 = scmp.lt.s32.totalorder %s9, 2
    // Predicated region
    $region13: #{tpu_custom_call.1} parent=5 // pred_check
      %p156 = pneg %p155
    $region14: #{tpu_custom_call.1} parent=5 // pred_check_branch
      %158 = sbr.rel (%p156) target = $region16
    $region15: #{tpu_custom_call.1} parent=5 // pred_region
      // Predicated region
      $region17: #{tpu_custom_call.1} parent=15 // pred_check
        %p159 = pneg %p50
      $region18: #{tpu_custom_call.1} parent=15 // pred_check_branch
        %161 = sbr.rel (%p159) target = $region20
      $region19: #{tpu_custom_call.1} parent=15 // pred_region
        %s162 = smul.u32 8, %s17
        %p163 = scmp.lt.s32.totalorder %s16, 1
        %s164 = scalar_select %p163, %s16, 1
        %p165 = scmp.lt.s32.totalorder %s162, 7
        %s166 = scalar_select %p165, %s162, 7
        %s167 = smul.addr %s164, 8
        %s168 = sadd.s32 %s166, %s167
        %s169 = smul.addr %s168, 8
        %s170 = scalar_lea.vmem %s0, %s169
        %s171 = smul.u32 8, %s17
      $region20: #{tpu_custom_call.1} parent=15 // pred_fallthru
        _
      // Predicated region
      $region21: #{tpu_custom_call.1} parent=15 // pred_check
        %p172 = pneg %p78
      $region22: #{tpu_custom_call.1} parent=15 // pred_check_branch
        %174 = sbr.rel (%p172) target = $region24
      $region23: #{tpu_custom_call.1} parent=15 // pred_region
        %s175 = smul.u32 8, %s18
        %p176 = scmp.lt.s32.totalorder %s16, 1
        %s177 = scalar_select %p176, %s16, 1
        %p178 = scmp.lt.s32.totalorder %s175, 7
        %s179 = scalar_select %p178, %s175, 7
        %s180 = smul.addr %s177, 8
        %s181 = sadd.s32 %s179, %s180
        %s182 = smul.addr %s181, 8
        %s183 = scalar_lea.vmem %s1, %s182
        %s184 = smul.u32 8, %s18
      $region24: #{tpu_custom_call.1} parent=15 // pred_fallthru
        _
      // Predicated region
      $region25: #{tpu_custom_call.1} parent=15 // pred_check
        %p185 = pneg %p106
      $region26: #{tpu_custom_call.1} parent=15 // pred_check_branch
        %187 = sbr.rel (%p185) target = $region28
      $region27: #{tpu_custom_call.1} parent=15 // pred_region
        %p188 = scmp.lt.s32.totalorder %s16, 1
        %s189 = scalar_select %p188, %s16, 1
        %p190 = scmp.lt.s32.totalorder %s18, 0
        %s191 = scalar_select %p190, %s18, 0
        %s192 = sadd.s32 %s191, %s189
        %s193 = scalar_lea.vmem %s2, %s192
      $region28: #{tpu_custom_call.1} parent=15 // pred_fallthru
        _
    $region16: #{tpu_custom_call.1} parent=5 // pred_fallthru
      _
    %p194 = scmp.le.s32.totalorder 1, %s9
    %p195 = scmp.lt.s32.totalorder %s9, 3
    %p196 = pnand %p194, %p195
    %p197 = pneg %p196
    // Predicated region
    $region29: #{tpu_custom_call.1} parent=5 // pred_check
      _
    $region30: #{tpu_custom_call.1} parent=5 // pred_check_branch
      %199 = sbr.rel (%p196) target = $region32
    $region31: #{tpu_custom_call.1} parent=5 // pred_region
      %s200 = ssub.s32 %s9, 1
      %s201 = smul.u32 8, %s20
      %p202 = scmp.lt.s32.totalorder %s19, 1
      %s203 = scalar_select %p202, %s19, 1
      %p204 = scmp.lt.s32.totalorder %s201, 7
      %s205 = scalar_select %p204, %s201, 7
      %s206 = smul.addr %s203, 8
      %s207 = sadd.s32 %s205, %s206
      %s208 = smul.addr %s207, 8
      %s209 = scalar_lea.vmem %s0, %s208
      %p210 = pneg %p56
      %p211 = pneg %p53
      %s212 = smul.u32 8, %s21
      %p213 = scmp.lt.s32.totalorder %s19, 1
      %s214 = scalar_select %p213, %s19, 1
      %p215 = scmp.lt.s32.totalorder %s212, 7
      %s216 = scalar_select %p215, %s212, 7
      %s217 = smul.addr %s214, 8
      %s218 = sadd.s32 %s216, %s217
      %s219 = smul.addr %s218, 8
      %s220 = scalar_lea.vmem %s1, %s219
      %p221 = pneg %p84
      %p222 = pneg %p81
      %p223 = scmp.lt.s32.totalorder %s19, 1
      %s224 = scalar_select %p223, %s19, 1
      %p225 = scmp.lt.s32.totalorder %s21, 0
      %s226 = scalar_select %p225, %s21, 0
      %s227 = sadd.s32 %s226, %s224
      %s228 = scalar_lea.vmem %s2, %s227
      %p229 = pneg %p112
      %p230 = pneg %p109
      %p231 = pneg %p140
      %p232 = pneg %p137
      %s233 = smul.u32 8, %s20
      %p234 = scmp.lt.s32.totalorder %s19, 1
      %s235 = scalar_select %p234, %s19, 1
      %p236 = scmp.lt.s32.totalorder %s233, 7
      %s237 = scalar_select %p236, %s233, 7
      %s238 = smul.addr %s235, 8
      %s239 = sadd.s32 %s237, %s238
      %s240 = smul.addr %s239, 8
      %s241 = scalar_lea.vmem %s3, %s240
      %s242 = smul.u32 8, %s20
      %p243 = scmp.lt.s32.totalorder %s19, 1
      %s244 = scalar_select %p243, %s19, 1
      %p245 = scmp.lt.s32.totalorder %s242, 7
      %s246 = scalar_select %p245, %s242, 7
      %s247 = smul.addr %s244, 8
      %s248 = sadd.s32 %s246, %s247
      %s249 = smul.addr %s248, 8
      %s250 = scalar_lea.vmem %s0, %s249
      %s251 = smul.u32 8, %s20
      %s252 = smul.u32 8, %s21
      %p253 = scmp.lt.s32.totalorder %s19, 1
      %s254 = scalar_select %p253, %s19, 1
      %p255 = scmp.lt.s32.totalorder %s252, 7
      %s256 = scalar_select %p255, %s252, 7
      %s257 = smul.addr %s254, 8
      %s258 = sadd.s32 %s256, %s257
      %s259 = smul.addr %s258, 8
      %s260 = scalar_lea.vmem %s1, %s259
      %s261 = smul.u32 8, %s21
      %p262 = scmp.lt.s32.totalorder %s19, 1
      %s263 = scalar_select %p262, %s19, 1
      %p264 = scmp.lt.s32.totalorder %s21, 0
      %s265 = scalar_select %p264, %s21, 0
      %s266 = sadd.s32 %s265, %s263
      %s267 = scalar_lea.vmem %s2, %s266
      %s268 = smul.u32 8, %s20
      %p269 = scmp.lt.s32.totalorder %s19, 1
      %s270 = scalar_select %p269, %s19, 1
      %p271 = scmp.lt.s32.totalorder %s268, 7
      %s272 = scalar_select %p271, %s268, 7
      %s273 = smul.addr %s270, 8
      %s274 = sadd.s32 %s272, %s273
      %s275 = smul.addr %s274, 8
      %s276 = scalar_lea.vmem %s3, %s275
      %s277 = smul.u32 8, %s20
      %p278 = scmp.eq.s32.totalorder %s21, 0
      // Predicated region
      $region33: #{tpu_custom_call.1} parent=31 // pred_check
        %p279 = pneg %p278
      $region34: #{tpu_custom_call.1} parent=31 // pred_check_branch
        %281 = sbr.rel (%p279) target = $region36
      $region35: #{tpu_custom_call.1} parent=31 // pred_region
        %vm282 = vcmask 64512
        %283 = vst.msk [vmem:[#allocation2] sm:$0xff] %vm282, inf
        %284 = vst.msk [vmem:[#allocation2 + $0x8] sm:$0xff] %vm282, inf
        %285 = vst.msk [vmem:[#allocation2 + $0x10] sm:$0xff] %vm282, inf
        %286 = vst.msk [vmem:[#allocation2 + $0x18] sm:$0xff] %vm282, inf
        %287 = vst.msk [vmem:[#allocation2 + $0x20] sm:$0xff] %vm282, inf
        %288 = vst.msk [vmem:[#allocation2 + $0x28] sm:$0xff] %vm282, inf
        %289 = vst.msk [vmem:[#allocation2 + $0x30] sm:$0xff] %vm282, inf
        %290 = vst.msk [vmem:[#allocation2 + $0x38] sm:$0xff] %vm282, inf
        %291 = vst.msk [vmem:[#allocation3] sm:$0xff] %vm282, 4294967295
        %292 = vst.msk [vmem:[#allocation3 + $0x8] sm:$0xff] %vm282, 4294967295
        %293 = vst.msk [vmem:[#allocation3 + $0x10] sm:$0xff] %vm282, 4294967295
        %294 = vst.msk [vmem:[#allocation3 + $0x18] sm:$0xff] %vm282, 4294967295
        %295 = vst.msk [vmem:[#allocation3 + $0x20] sm:$0xff] %vm282, 4294967295
        %296 = vst.msk [vmem:[#allocation3 + $0x28] sm:$0xff] %vm282, 4294967295
        %297 = vst.msk [vmem:[#allocation3 + $0x30] sm:$0xff] %vm282, 4294967295
        %298 = vst.msk [vmem:[#allocation3 + $0x38] sm:$0xff] %vm282, 4294967295
      $region36: #{tpu_custom_call.1} parent=31 // pred_fallthru
        _
      %v299 = vld [vmem:[%s250] sm:$0xff]
      %v300 = vld [vmem:[%s250 + $0x8] sm:$0xff]
      %v301 = vld [vmem:[%s250 + $0x10] sm:$0xff]
      %v302 = vld [vmem:[%s250 + $0x18] sm:$0xff]
      %v303 = vld [vmem:[%s250 + $0x20] sm:$0xff]
      %v304 = vld [vmem:[%s250 + $0x28] sm:$0xff]
      %v305 = vld [vmem:[%s250 + $0x30] sm:$0xff]
      %v306 = vld [vmem:[%s250 + $0x38] sm:$0xff]
      %v307 = vld [vmem:[%s260] sm:$0xff]
      %v308 = vld [vmem:[%s260 + $0x8] sm:$0xff]
      %v309 = vld [vmem:[%s260 + $0x10] sm:$0xff]
      %v310 = vld [vmem:[%s260 + $0x18] sm:$0xff]
      %v311 = vld [vmem:[%s260 + $0x20] sm:$0xff]
      %v312 = vld [vmem:[%s260 + $0x28] sm:$0xff]
      %v313 = vld [vmem:[%s260 + $0x30] sm:$0xff]
      %v314 = vld [vmem:[%s260 + $0x38] sm:$0xff]
      %vm315 = vcmask 23552
      %v317 = vsel %vm315, %v299, 0
      %v320 = vsel %vm315, %v300, 0
      %v323 = vsel %vm315, %v301, 0
      %v326 = vsel %vm315, %v302, 0
      %v329 = vsel %vm315, %v303, 0
      %v332 = vsel %vm315, %v304, 0
      %v335 = vsel %vm315, %v305, 0
      %v338 = vsel %vm315, %v306, 0
      %v341 = vsel %vm315, %v307, 0
      %v344 = vsel %vm315, %v308, 0
      %v347 = vsel %vm315, %v309, 0
      %v350 = vsel %vm315, %v310, 0
      %v353 = vsel %vm315, %v311, 0
      %v356 = vsel %vm315, %v312, 0
      %v359 = vsel %vm315, %v313, 0
      %v362 = vsel %vm315, %v314, 0
      %364 = vmatprep.subr.mxu0 0.0
      %365 = vmatpush1.xpose.msra.mxu0 %v341
      %366 = vmatprep.subr.mxu0 0.0
      %367 = vmatpush1.xpose.msra.mxu0 %v344
      %368 = vmatprep.subr.mxu0 0.0
      %369 = vmatpush1.xpose.msra.mxu0 %v347
      %370 = vmatprep.subr.mxu0 0.0
      %371 = vmatpush1.xpose.msra.mxu0 %v350
      %372 = vmatprep.subr.mxu0 0.0
      %373 = vmatpush1.xpose.msra.mxu0 %v353
      %374 = vmatprep.subr.mxu0 0.0
      %375 = vmatpush1.xpose.msra.mxu0 %v356
      %376 = vmatprep.subr.mxu0 0.0
      %377 = vmatpush1.xpose.msra.mxu0 %v359
      %378 = vmatprep.subr.mxu0 0.0
      %379 = vmatpush1.xpose.msra.mxu0 %v362
      %380 = vmatprep.subr.mxu0 0.0
      %381 = vmatpush1.xpose.msra.mxu0 0.0
      %382 = vmatprep.subr.mxu0 0.0
      %383 = vmatpush1.xpose.msra.mxu0 0.0
      %384 = vmatprep.subr.mxu0 0.0
      %385 = vmatpush1.xpose.msra.mxu0 0.0
      %386 = vmatprep.subr.mxu0 0.0
      %387 = vmatpush1.xpose.msra.mxu0 0.0
      %388 = vmatprep.subr.mxu0 0.0
      %389 = vmatpush1.xpose.msra.mxu0 0.0
      %390 = vmatprep.subr.mxu0 0.0
      %391 = vmatpush1.xpose.msra.mxu0 0.0
      %392 = vmatprep.subr.mxu0 0.0
      %393 = vmatpush1.xpose.msra.mxu0 0.0
      %394 = vmatprep.subr.mxu0 0.0
      %395 = vmatpush1.xpose.msra.mxu0 0.0
      %396 = vmatprep.subr.mxu0 0.0
      %397 = vmatpush1.xpose.msra.mxu0 0.0
      %398 = vmatprep.subr.mxu0 0.0
      %399 = vmatpush1.xpose.msra.mxu0 0.0
      %400 = vmatprep.subr.mxu0 0.0
      %401 = vmatpush1.xpose.msra.mxu0 0.0
      %402 = vmatprep.subr.mxu0 0.0
      %403 = vmatpush1.xpose.msra.mxu0 0.0
      %404 = vmatprep.subr.mxu0 0.0
      %405 = vmatpush1.xpose.msra.mxu0 0.0
      %406 = vmatprep.subr.mxu0 0.0
      %407 = vmatpush1.xpose.msra.mxu0 0.0
      %408 = vmatprep.subr.mxu0 0.0
      %409 = vmatpush1.xpose.msra.mxu0 0.0
      %410 = vmatprep.subr.mxu0 0.0
      %411 = vmatpush1.xpose.msra.mxu0 0.0
      %412 = vmatprep.subr.mxu0 0.0
      %413 = vmatpush1.xpose.msra.mxu0 0.0
      %414 = vmatprep.subr.mxu0 0.0
      %415 = vmatpush1.xpose.msra.mxu0 0.0
      %416 = vmatprep.subr.mxu0 0.0
      %417 = vmatpush1.xpose.msra.mxu0 0.0
      %418 = vmatprep.subr.mxu0 0.0
      %419 = vmatpush1.xpose.msra.mxu0 0.0
      %420 = vmatprep.subr.mxu0 0.0
      %421 = vmatpush1.xpose.msra.mxu0 0.0
      %422 = vmatprep.subr.mxu0 0.0
      %423 = vmatpush1.xpose.msra.mxu0 0.0
      %424 = vmatprep.subr.mxu0 0.0
      %425 = vmatpush1.xpose.msra.mxu0 0.0
      %426 = vmatprep.subr.mxu0 0.0
      %427 = vmatpush1.xpose.msra.mxu0 0.0
      %428 = vmatprep.mubr.f32.mxu0 0.0
      %429 = vmatmul.mubr.f32.gmra.mrb[0].mxu0 %v317
      %v430 = vpop.f32.mrb[0].mxu0
      %v431 = vadd.f32 0.0, %v430
      %v432 = vpop.f32.mrb[0].mxu0
      %433 = vmatprep.mubr.f32.mxu0 0.0
      %434 = vmatmul.mubr.f32.gmra.mrb[0].mxu0 %v320
      %v435 = vpop.f32.mrb[0].mxu0
      %v436 = vadd.f32 0.0, %v435
      %v437 = vpop.f32.mrb[0].mxu0
      %438 = vmatprep.mubr.f32.mxu0 0.0
      %439 = vmatmul.mubr.f32.gmra.mrb[0].mxu0 %v323
      %v440 = vpop.f32.mrb[0].mxu0
      %v441 = vadd.f32 0.0, %v440
      %v442 = vpop.f32.mrb[0].mxu0
      %443 = vmatprep.mubr.f32.mxu0 0.0
      %444 = vmatmul.mubr.f32.gmra.mrb[0].mxu0 %v326
      %v445 = vpop.f32.mrb[0].mxu0
      %v446 = vadd.f32 0.0, %v445
      %v447 = vpop.f32.mrb[0].mxu0
      %448 = vmatprep.mubr.f32.mxu0 0.0
      %449 = vmatmul.mubr.f32.gmra.mrb[0].mxu0 %v329
      %v450 = vpop.f32.mrb[0].mxu0
      %v451 = vadd.f32 0.0, %v450
      %v452 = vpop.f32.mrb[0].mxu0
      %453 = vmatprep.mubr.f32.mxu0 0.0
      %454 = vmatmul.mubr.f32.gmra.mrb[0].mxu0 %v332
      %v455 = vpop.f32.mrb[0].mxu0
      %v456 = vadd.f32 0.0, %v455
      %v457 = vpop.f32.mrb[0].mxu0
      %458 = vmatprep.mubr.f32.mxu0 0.0
      %459 = vmatmul.mubr.f32.gmra.mrb[0].mxu0 %v335
      %v460 = vpop.f32.mrb[0].mxu0
      %v461 = vadd.f32 0.0, %v460
      %v462 = vpop.f32.mrb[0].mxu0
      %463 = vmatprep.mubr.f32.mxu0 0.0
      %464 = vmatmul.mubr.f32.gmra.mrb[0].mxu0 %v338
      %v465 = vpop.f32.mrb[0].mxu0
      %v466 = vadd.f32 0.0, %v465
      %v467 = vpop.f32.mrb[0].mxu0
      %468 = vdwg.mxu0
      %v469 = vld [vmem:[%s267] sm:$0x1]
      %v470 = vmul.f32 %v431, 2.0
      %v471 = vmul.f32 %v436, 2.0
      %v472 = vmul.f32 %v441, 2.0
      %v473 = vmul.f32 %v446, 2.0
      %v474 = vmul.f32 %v451, 2.0
      %v475 = vmul.f32 %v456, 2.0
      %v476 = vmul.f32 %v461, 2.0
      %v477 = vmul.f32 %v466, 2.0
      %v479 = vlaneseq
      %v480 = vshrl.u32 %v479, 7
      %v481 = vsub.s32 0, %v480
      %v482 = vrot.slane %v469, %v481
      %v484 = vsub.f32 %v482, %v470
      %v485 = vsub.f32 %v482, %v471
      %v486 = vsub.f32 %v482, %v472
      %v487 = vsub.f32 %v482, %v473
      %v488 = vsub.f32 %v482, %v474
      %v489 = vsub.f32 %v482, %v475
      %v490 = vsub.f32 %v482, %v476
      %v491 = vsub.f32 %v482, %v477
      %s492 = smul.u32 %s21, 64
      %v493 = vlaneseq
      %v494 = vand.u32 %v493, 127
      %v495 = vstv %s492
      %v496 = vadd.s32 %v495, %v494
      %vm497 = vcmp.lt.s32.totalorder %v496, 64
      %v498 = vsel %vm497, %v484, inf
      %v499 = vsel %vm497, %v485, inf
      %v500 = vsel %vm497, %v486, inf
      %v501 = vsel %vm497, %v487, inf
      %v502 = vsel %vm497, %v488, inf
      %v503 = vsel %vm497, %v489, inf
      %v504 = vsel %vm497, %v490, inf
      %v505 = vsel %vm497, %v491, inf
      %v506 = vld [vmem:[#allocation2] sm:$0xff]
      %v507 = vld [vmem:[#allocation2 + $0x8] sm:$0xff]
      %v508 = vld [vmem:[#allocation2 + $0x10] sm:$0xff]
      %v509 = vld [vmem:[#allocation2 + $0x18] sm:$0xff]
      %v510 = vld [vmem:[#allocation2 + $0x20] sm:$0xff]
      %v511 = vld [vmem:[#allocation2 + $0x28] sm:$0xff]
      %v512 = vld [vmem:[#allocation2 + $0x30] sm:$0xff]
      %v513 = vld [vmem:[#allocation2 + $0x38] sm:$0xff]
      %522 = vrot.lane.b32.xlu0 %v498, 8
      %v523 = vpop.permute.xlu0 %522
      %524 = vrot.lane.b32.xlu0 %v499, 8
      %v525 = vpop.permute.xlu0 %524
      %526 = vrot.lane.b32.xlu0 %v500, 8
      %v527 = vpop.permute.xlu0 %526
      %528 = vrot.lane.b32.xlu0 %v501, 8
      %v529 = vpop.permute.xlu0 %528
      %530 = vrot.lane.b32.xlu0 %v502, 8
      %v531 = vpop.permute.xlu0 %530
      %532 = vrot.lane.b32.xlu0 %v503, 8
      %v533 = vpop.permute.xlu0 %532
      %534 = vrot.lane.b32.xlu0 %v504, 8
      %v535 = vpop.permute.xlu0 %534
      %536 = vrot.lane.b32.xlu0 %v505, 8
      %v537 = vpop.permute.xlu0 %536
      %vm546 = vcmask 64512
      %v547 = vsel %vm546, %v506, %v523
      %v548 = vsel %vm546, %v507, %v525
      %v549 = vsel %vm546, %v508, %v527
      %v550 = vsel %vm546, %v509, %v529
      %v551 = vsel %vm546, %v510, %v531
      %v552 = vsel %vm546, %v511, %v533
      %v553 = vsel %vm546, %v512, %v535
      %v554 = vsel %vm546, %v513, %v537
      %v555 = vld [vmem:[#allocation3] sm:$0xff]
      %v556 = vld [vmem:[#allocation3 + $0x8] sm:$0xff]
      %v557 = vld [vmem:[#allocation3 + $0x10] sm:$0xff]
      %v558 = vld [vmem:[#allocation3 + $0x18] sm:$0xff]
      %v559 = vld [vmem:[#allocation3 + $0x20] sm:$0xff]
      %v560 = vld [vmem:[#allocation3 + $0x28] sm:$0xff]
      %v561 = vld [vmem:[#allocation3 + $0x30] sm:$0xff]
      %v562 = vld [vmem:[#allocation3 + $0x38] sm:$0xff]
      %563 = vrot.lane.b32.xlu0 %v496, 8
      %v564 = vpop.permute.xlu0 %563
      %v565 = vsel %vm546, %v555, %v564
      %v566 = vsel %vm546, %v556, %v564
      %v567 = vsel %vm546, %v557, %v564
      %v568 = vsel %vm546, %v558, %v564
      %v569 = vsel %vm546, %v559, %v564
      %v570 = vsel %vm546, %v560, %v564
      %v571 = vsel %vm546, %v561, %v564
      %v572 = vsel %vm546, %v562, %v564
      %vm573 = vcmask 588800
      %v574 = vsel %vm573, %v547, inf
      %575 = vmin.xlane.f32.xlu0 %v574
      %v576 = vpop.xlane.xlu0 %575
      %v577 = vsel %vm573, %v548, inf
      %578 = vmin.xlane.f32.xlu0 %v577
      %v579 = vpop.xlane.xlu0 %578
      %v580 = vsel %vm573, %v549, inf
      %581 = vmin.xlane.f32.xlu0 %v580
      %v582 = vpop.xlane.xlu0 %581
      %v583 = vsel %vm573, %v550, inf
      %584 = vmin.xlane.f32.xlu0 %v583
      %v585 = vpop.xlane.xlu0 %584
      %v586 = vsel %vm573, %v551, inf
      %587 = vmin.xlane.f32.xlu0 %v586
      %v588 = vpop.xlane.xlu0 %587
      %v589 = vsel %vm573, %v552, inf
      %590 = vmin.xlane.f32.xlu0 %v589
      %v591 = vpop.xlane.xlu0 %590
      %v592 = vsel %vm573, %v553, inf
      %593 = vmin.xlane.f32.xlu0 %v592
      %v594 = vpop.xlane.xlu0 %593
      %v595 = vsel %vm573, %v554, inf
      %596 = vmin.xlane.f32.xlu0 %v595
      %v597 = vpop.xlane.xlu0 %596
      %vm598 = vcmp.eq.f32.partialorder %v547, %v576
      %vm599 = vcmp.eq.f32.partialorder %v548, %v579
      %vm600 = vcmp.eq.f32.partialorder %v549, %v582
      %vm601 = vcmp.eq.f32.partialorder %v550, %v585
      %vm602 = vcmp.eq.f32.partialorder %v551, %v588
      %vm603 = vcmp.eq.f32.partialorder %v552, %v591
      %vm604 = vcmp.eq.f32.partialorder %v553, %v594
      %vm605 = vcmp.eq.f32.partialorder %v554, %v597
      %v606 = vsel %vm598, %v565, 2147483647
      %v607 = vsel %vm599, %v566, 2147483647
      %v608 = vsel %vm600, %v567, 2147483647
      %v609 = vsel %vm601, %v568, 2147483647
      %v610 = vsel %vm602, %v569, 2147483647
      %v611 = vsel %vm603, %v570, 2147483647
      %v612 = vsel %vm604, %v571, 2147483647
      %v613 = vsel %vm605, %v572, 2147483647
      %v614 = vsel %vm573, %v606, 2147483647
      %v615 = vand.u32 %v614, 65535
      %v616 = vshra.s32 %v614, 16
      %v617 = vcvt.s32.f32 %v615
      %v618 = vcvt.s32.f32 %v616
      %619 = vmin.xlane.f32.xlu0 %v618
      %v620 = vpop.xlane.xlu0 %619
      %vm621 = vcmp.eq.f32.partialorder %v618, %v620
      %v622 = vsel %vm621, %v617, inf
      %623 = vmin.xlane.f32.xlu0 %v622
      %v624 = vpop.xlane.xlu0 %623
      %v625 = vcvt.f32.s32 %v624
      %v626 = vcvt.f32.s32 %v620
      %v627 = vshll.u32 %v626, 16
      %v628 = vadd.s32 %v627, %v625
      %v629 = vsel %vm573, %v607, 2147483647
      %v630 = vand.u32 %v629, 65535
      %v631 = vshra.s32 %v629, 16
      %v632 = vcvt.s32.f32 %v630
      %v633 = vcvt.s32.f32 %v631
      %634 = vmin.xlane.f32.xlu0 %v633
      %v635 = vpop.xlane.xlu0 %634
      %vm636 = vcmp.eq.f32.partialorder %v633, %v635
      %v637 = vsel %vm636, %v632, inf
      %638 = vmin.xlane.f32.xlu0 %v637
      %v639 = vpop.xlane.xlu0 %638
      %v640 = vcvt.f32.s32 %v639
      %v641 = vcvt.f32.s32 %v635
      %v642 = vshll.u32 %v641, 16
      %v643 = vadd.s32 %v642, %v640
      %v644 = vsel %vm573, %v608, 2147483647
      %v645 = vand.u32 %v644, 65535
      %v646 = vshra.s32 %v644, 16
      %v647 = vcvt.s32.f32 %v645
      %v648 = vcvt.s32.f32 %v646
      %649 = vmin.xlane.f32.xlu0 %v648
      %v650 = vpop.xlane.xlu0 %649
      %vm651 = vcmp.eq.f32.partialorder %v648, %v650
      %v652 = vsel %vm651, %v647, inf
      %653 = vmin.xlane.f32.xlu0 %v652
      %v654 = vpop.xlane.xlu0 %653
      %v655 = vcvt.f32.s32 %v654
      %v656 = vcvt.f32.s32 %v650
      %v657 = vshll.u32 %v656, 16
      %v658 = vadd.s32 %v657, %v655
      %v659 = vsel %vm573, %v609, 2147483647
      %v660 = vand.u32 %v659, 65535
      %v661 = vshra.s32 %v659, 16
      %v662 = vcvt.s32.f32 %v660
      %v663 = vcvt.s32.f32 %v661
      %664 = vmin.xlane.f32.xlu0 %v663
      %v665 = vpop.xlane.xlu0 %664
      %vm666 = vcmp.eq.f32.partialorder %v663, %v665
      %v667 = vsel %vm666, %v662, inf
      %668 = vmin.xlane.f32.xlu0 %v667
      %v669 = vpop.xlane.xlu0 %668
      %v670 = vcvt.f32.s32 %v669
      %v671 = vcvt.f32.s32 %v665
      %v672 = vshll.u32 %v671, 16
      %v673 = vadd.s32 %v672, %v670
      %v674 = vsel %vm573, %v610, 2147483647
      %v675 = vand.u32 %v674, 65535
      %v676 = vshra.s32 %v674, 16
      %v677 = vcvt.s32.f32 %v675
      %v678 = vcvt.s32.f32 %v676
      %679 = vmin.xlane.f32.xlu0 %v678
      %v680 = vpop.xlane.xlu0 %679
      %vm681 = vcmp.eq.f32.partialorder %v678, %v680
      %v682 = vsel %vm681, %v677, inf
      %683 = vmin.xlane.f32.xlu0 %v682
      %v684 = vpop.xlane.xlu0 %683
      %v685 = vcvt.f32.s32 %v684
      %v686 = vcvt.f32.s32 %v680
      %v687 = vshll.u32 %v686, 16
      %v688 = vadd.s32 %v687, %v685
      %v689 = vsel %vm573, %v611, 2147483647
      %v690 = vand.u32 %v689, 65535
      %v691 = vshra.s32 %v689, 16
      %v692 = vcvt.s32.f32 %v690
      %v693 = vcvt.s32.f32 %v691
      %694 = vmin.xlane.f32.xlu0 %v693
      %v695 = vpop.xlane.xlu0 %694
      %vm696 = vcmp.eq.f32.partialorder %v693, %v695
      %v697 = vsel %vm696, %v692, inf
      %698 = vmin.xlane.f32.xlu0 %v697
      %v699 = vpop.xlane.xlu0 %698
      %v700 = vcvt.f32.s32 %v699
      %v701 = vcvt.f32.s32 %v695
      %v702 = vshll.u32 %v701, 16
      %v703 = vadd.s32 %v702, %v700
      %v704 = vsel %vm573, %v612, 2147483647
      %v705 = vand.u32 %v704, 65535
      %v706 = vshra.s32 %v704, 16
      %v707 = vcvt.s32.f32 %v705
      %v708 = vcvt.s32.f32 %v706
      %709 = vmin.xlane.f32.xlu0 %v708
      %v710 = vpop.xlane.xlu0 %709
      %vm711 = vcmp.eq.f32.partialorder %v708, %v710
      %v712 = vsel %vm711, %v707, inf
      %713 = vmin.xlane.f32.xlu0 %v712
      %v714 = vpop.xlane.xlu0 %713
      %v715 = vcvt.f32.s32 %v714
      %v716 = vcvt.f32.s32 %v710
      %v717 = vshll.u32 %v716, 16
      %v718 = vadd.s32 %v717, %v715
      %v719 = vsel %vm573, %v613, 2147483647
      %v720 = vand.u32 %v719, 65535
      %v721 = vshra.s32 %v719, 16
      %v722 = vcvt.s32.f32 %v720
      %v723 = vcvt.s32.f32 %v721
      %724 = vmin.xlane.f32.xlu0 %v723
      %v725 = vpop.xlane.xlu0 %724
      %vm726 = vcmp.eq.f32.partialorder %v723, %v725
      %v727 = vsel %vm726, %v722, inf
      %728 = vmin.xlane.f32.xlu0 %v727
      %v729 = vpop.xlane.xlu0 %728
      %v730 = vcvt.f32.s32 %v729
      %v731 = vcvt.f32.s32 %v725
      %v732 = vshll.u32 %v731, 16
      %v733 = vadd.s32 %v732, %v730
      %vm734 = vcmp.eq.s32.totalorder %v565, %v628
      %vm735 = vcmp.eq.s32.totalorder %v566, %v643
      %vm736 = vcmp.eq.s32.totalorder %v567, %v658
      %vm737 = vcmp.eq.s32.totalorder %v568, %v673
      %vm738 = vcmp.eq.s32.totalorder %v569, %v688
      %vm739 = vcmp.eq.s32.totalorder %v570, %v703
      %vm740 = vcmp.eq.s32.totalorder %v571, %v718
      %vm741 = vcmp.eq.s32.totalorder %v572, %v733
      %v742 = vsel %vm734, inf, %v547
      %v743 = vsel %vm735, inf, %v548
      %v744 = vsel %vm736, inf, %v549
      %v745 = vsel %vm737, inf, %v550
      %v746 = vsel %vm738, inf, %v551
      %v747 = vsel %vm739, inf, %v552
      %v748 = vsel %vm740, inf, %v553
      %v749 = vsel %vm741, inf, %v554
      %v750 = vsel %vm573, %v742, inf
      %751 = vmin.xlane.f32.xlu0 %v750
      %v752 = vpop.xlane.xlu0 %751
      %v753 = vsel %vm573, %v743, inf
      %754 = vmin.xlane.f32.xlu0 %v753
      %v755 = vpop.xlane.xlu0 %754
      %v756 = vsel %vm573, %v744, inf
      %757 = vmin.xlane.f32.xlu0 %v756
      %v758 = vpop.xlane.xlu0 %757
      %v759 = vsel %vm573, %v745, inf
      %760 = vmin.xlane.f32.xlu0 %v759
      %v761 = vpop.xlane.xlu0 %760
      %v762 = vsel %vm573, %v746, inf
      %763 = vmin.xlane.f32.xlu0 %v762
      %v764 = vpop.xlane.xlu0 %763
      %v765 = vsel %vm573, %v747, inf
      %766 = vmin.xlane.f32.xlu0 %v765
      %v767 = vpop.xlane.xlu0 %766
      %v768 = vsel %vm573, %v748, inf
      %769 = vmin.xlane.f32.xlu0 %v768
      %v770 = vpop.xlane.xlu0 %769
      %v771 = vsel %vm573, %v749, inf
      %772 = vmin.xlane.f32.xlu0 %v771
      %v773 = vpop.xlane.xlu0 %772
      %vm774 = vcmp.eq.f32.partialorder %v742, %v752
      %vm775 = vcmp.eq.f32.partialorder %v743, %v755
      %vm776 = vcmp.eq.f32.partialorder %v744, %v758
      %vm777 = vcmp.eq.f32.partialorder %v745, %v761
      %vm778 = vcmp.eq.f32.partialorder %v746, %v764
      %vm779 = vcmp.eq.f32.partialorder %v747, %v767
      %vm780 = vcmp.eq.f32.partialorder %v748, %v770
      %vm781 = vcmp.eq.f32.partialorder %v749, %v773
      %v782 = vsel %vm774, %v565, 2147483647
      %v783 = vsel %vm775, %v566, 2147483647
      %v784 = vsel %vm776, %v567, 2147483647
      %v785 = vsel %vm777, %v568, 2147483647
      %v786 = vsel %vm778, %v569, 2147483647
      %v787 = vsel %vm779, %v570, 2147483647
      %v788 = vsel %vm780, %v571, 2147483647
      %v789 = vsel %vm781, %v572, 2147483647
      %v790 = vsel %vm573, %v782, 2147483647
      %v791 = vand.u32 %v790, 65535
      %v792 = vshra.s32 %v790, 16
      %v793 = vcvt.s32.f32 %v791
      %v794 = vcvt.s32.f32 %v792
      %795 = vmin.xlane.f32.xlu0 %v794
      %v796 = vpop.xlane.xlu0 %795
      %vm797 = vcmp.eq.f32.partialorder %v794, %v796
      %v798 = vsel %vm797, %v793, inf
      %799 = vmin.xlane.f32.xlu0 %v798
      %v800 = vpop.xlane.xlu0 %799
      %v801 = vcvt.f32.s32 %v800
      %v802 = vcvt.f32.s32 %v796
      %v803 = vshll.u32 %v802, 16
      %v804 = vadd.s32 %v803, %v801
      %v805 = vsel %vm573, %v783, 2147483647
      %v806 = vand.u32 %v805, 65535
      %v807 = vshra.s32 %v805, 16
      %v808 = vcvt.s32.f32 %v806
      %v809 = vcvt.s32.f32 %v807
      %810 = vmin.xlane.f32.xlu0 %v809
      %v811 = vpop.xlane.xlu0 %810
      %vm812 = vcmp.eq.f32.partialorder %v809, %v811
      %v813 = vsel %vm812, %v808, inf
      %814 = vmin.xlane.f32.xlu0 %v813
      %v815 = vpop.xlane.xlu0 %814
      %v816 = vcvt.f32.s32 %v815
      %v817 = vcvt.f32.s32 %v811
      %v818 = vshll.u32 %v817, 16
      %v819 = vadd.s32 %v818, %v816
      %v820 = vsel %vm573, %v784, 2147483647
      %v821 = vand.u32 %v820, 65535
      %v822 = vshra.s32 %v820, 16
      %v823 = vcvt.s32.f32 %v821
      %v824 = vcvt.s32.f32 %v822
      %825 = vmin.xlane.f32.xlu0 %v824
      %v826 = vpop.xlane.xlu0 %825
      %vm827 = vcmp.eq.f32.partialorder %v824, %v826
      %v828 = vsel %vm827, %v823, inf
      %829 = vmin.xlane.f32.xlu0 %v828
      %v830 = vpop.xlane.xlu0 %829
      %v831 = vcvt.f32.s32 %v830
      %v832 = vcvt.f32.s32 %v826
      %v833 = vshll.u32 %v832, 16
      %v834 = vadd.s32 %v833, %v831
      %v835 = vsel %vm573, %v785, 2147483647
      %v836 = vand.u32 %v835, 65535
      %v837 = vshra.s32 %v835, 16
      %v838 = vcvt.s32.f32 %v836
      %v839 = vcvt.s32.f32 %v837
      %840 = vmin.xlane.f32.xlu0 %v839
      %v841 = vpop.xlane.xlu0 %840
      %vm842 = vcmp.eq.f32.partialorder %v839, %v841
      %v843 = vsel %vm842, %v838, inf
      %844 = vmin.xlane.f32.xlu0 %v843
      %v845 = vpop.xlane.xlu0 %844
      %v846 = vcvt.f32.s32 %v845
      %v847 = vcvt.f32.s32 %v841
      %v848 = vshll.u32 %v847, 16
      %v849 = vadd.s32 %v848, %v846
      %v850 = vsel %vm573, %v786, 2147483647
      %v851 = vand.u32 %v850, 65535
      %v852 = vshra.s32 %v850, 16
      %v853 = vcvt.s32.f32 %v851
      %v854 = vcvt.s32.f32 %v852
      %855 = vmin.xlane.f32.xlu0 %v854
      %v856 = vpop.xlane.xlu0 %855
      %vm857 = vcmp.eq.f32.partialorder %v854, %v856
      %v858 = vsel %vm857, %v853, inf
      %859 = vmin.xlane.f32.xlu0 %v858
      %v860 = vpop.xlane.xlu0 %859
      %v861 = vcvt.f32.s32 %v860
      %v862 = vcvt.f32.s32 %v856
      %v863 = vshll.u32 %v862, 16
      %v864 = vadd.s32 %v863, %v861
      %v865 = vsel %vm573, %v787, 2147483647
      %v866 = vand.u32 %v865, 65535
      %v867 = vshra.s32 %v865, 16
      %v868 = vcvt.s32.f32 %v866
      %v869 = vcvt.s32.f32 %v867
      %870 = vmin.xlane.f32.xlu0 %v869
      %v871 = vpop.xlane.xlu0 %870
      %vm872 = vcmp.eq.f32.partialorder %v869, %v871
      %v873 = vsel %vm872, %v868, inf
      %874 = vmin.xlane.f32.xlu0 %v873
      %v875 = vpop.xlane.xlu0 %874
      %v876 = vcvt.f32.s32 %v875
      %v877 = vcvt.f32.s32 %v871
      %v878 = vshll.u32 %v877, 16
      %v879 = vadd.s32 %v878, %v876
      %v880 = vsel %vm573, %v788, 2147483647
      %v881 = vand.u32 %v880, 65535
      %v882 = vshra.s32 %v880, 16
      %v883 = vcvt.s32.f32 %v881
      %v884 = vcvt.s32.f32 %v882
      %885 = vmin.xlane.f32.xlu0 %v884
      %v886 = vpop.xlane.xlu0 %885
      %vm887 = vcmp.eq.f32.partialorder %v884, %v886
      %v888 = vsel %vm887, %v883, inf
      %889 = vmin.xlane.f32.xlu0 %v888
      %v890 = vpop.xlane.xlu0 %889
      %v891 = vcvt.f32.s32 %v890
      %v892 = vcvt.f32.s32 %v886
      %v893 = vshll.u32 %v892, 16
      %v894 = vadd.s32 %v893, %v891
      %v895 = vsel %vm573, %v789, 2147483647
      %v896 = vand.u32 %v895, 65535
      %v897 = vshra.s32 %v895, 16
      %v898 = vcvt.s32.f32 %v896
      %v899 = vcvt.s32.f32 %v897
      %900 = vmin.xlane.f32.xlu0 %v899
      %v901 = vpop.xlane.xlu0 %900
      %vm902 = vcmp.eq.f32.partialorder %v899, %v901
      %v903 = vsel %vm902, %v898, inf
      %904 = vmin.xlane.f32.xlu0 %v903
      %v905 = vpop.xlane.xlu0 %904
      %v906 = vcvt.f32.s32 %v905
      %v907 = vcvt.f32.s32 %v901
      %v908 = vshll.u32 %v907, 16
      %v909 = vadd.s32 %v908, %v906
      %vm910 = vcmp.eq.s32.totalorder %v565, %v804
      %vm911 = vcmp.eq.s32.totalorder %v566, %v819
      %vm912 = vcmp.eq.s32.totalorder %v567, %v834
      %vm913 = vcmp.eq.s32.totalorder %v568, %v849
      %vm914 = vcmp.eq.s32.totalorder %v569, %v864
      %vm915 = vcmp.eq.s32.totalorder %v570, %v879
      %vm916 = vcmp.eq.s32.totalorder %v571, %v894
      %vm917 = vcmp.eq.s32.totalorder %v572, %v909
      %v918 = vsel %vm910, inf, %v742
      %v919 = vsel %vm911, inf, %v743
      %v920 = vsel %vm912, inf, %v744
      %v921 = vsel %vm913, inf, %v745
      %v922 = vsel %vm914, inf, %v746
      %v923 = vsel %vm915, inf, %v747
      %v924 = vsel %vm916, inf, %v748
      %v925 = vsel %vm917, inf, %v749
      %v926 = vsel %vm573, %v918, inf
      %927 = vmin.xlane.f32.xlu0 %v926
      %v928 = vpop.xlane.xlu0 %927
      %v929 = vsel %vm573, %v919, inf
      %930 = vmin.xlane.f32.xlu0 %v929
      %v931 = vpop.xlane.xlu0 %930
      %v932 = vsel %vm573, %v920, inf
      %933 = vmin.xlane.f32.xlu0 %v932
      %v934 = vpop.xlane.xlu0 %933
      %v935 = vsel %vm573, %v921, inf
      %936 = vmin.xlane.f32.xlu0 %v935
      %v937 = vpop.xlane.xlu0 %936
      %v938 = vsel %vm573, %v922, inf
      %939 = vmin.xlane.f32.xlu0 %v938
      %v940 = vpop.xlane.xlu0 %939
      %v941 = vsel %vm573, %v923, inf
      %942 = vmin.xlane.f32.xlu0 %v941
      %v943 = vpop.xlane.xlu0 %942
      %v944 = vsel %vm573, %v924, inf
      %945 = vmin.xlane.f32.xlu0 %v944
      %v946 = vpop.xlane.xlu0 %945
      %v947 = vsel %vm573, %v925, inf
      %948 = vmin.xlane.f32.xlu0 %v947
      %v949 = vpop.xlane.xlu0 %948
      %vm950 = vcmp.eq.f32.partialorder %v918, %v928
      %vm951 = vcmp.eq.f32.partialorder %v919, %v931
      %vm952 = vcmp.eq.f32.partialorder %v920, %v934
      %vm953 = vcmp.eq.f32.partialorder %v921, %v937
      %vm954 = vcmp.eq.f32.partialorder %v922, %v940
      %vm955 = vcmp.eq.f32.partialorder %v923, %v943
      %vm956 = vcmp.eq.f32.partialorder %v924, %v946
      %vm957 = vcmp.eq.f32.partialorder %v925, %v949
      %v958 = vsel %vm950, %v565, 2147483647
      %v959 = vsel %vm951, %v566, 2147483647
      %v960 = vsel %vm952, %v567, 2147483647
      %v961 = vsel %vm953, %v568, 2147483647
      %v962 = vsel %vm954, %v569, 2147483647
      %v963 = vsel %vm955, %v570, 2147483647
      %v964 = vsel %vm956, %v571, 2147483647
      %v965 = vsel %vm957, %v572, 2147483647
      %v966 = vsel %vm573, %v958, 2147483647
      %v967 = vand.u32 %v966, 65535
      %v968 = vshra.s32 %v966, 16
      %v969 = vcvt.s32.f32 %v967
      %v970 = vcvt.s32.f32 %v968
      %971 = vmin.xlane.f32.xlu0 %v970
      %v972 = vpop.xlane.xlu0 %971
      %vm973 = vcmp.eq.f32.partialorder %v970, %v972
      %v974 = vsel %vm973, %v969, inf
      %975 = vmin.xlane.f32.xlu0 %v974
      %v976 = vpop.xlane.xlu0 %975
      %v977 = vcvt.f32.s32 %v976
      %v978 = vcvt.f32.s32 %v972
      %v979 = vshll.u32 %v978, 16
      %v980 = vadd.s32 %v979, %v977
      %v981 = vsel %vm573, %v959, 2147483647
      %v982 = vand.u32 %v981, 65535
      %v983 = vshra.s32 %v981, 16
      %v984 = vcvt.s32.f32 %v982
      %v985 = vcvt.s32.f32 %v983
      %986 = vmin.xlane.f32.xlu0 %v985
      %v987 = vpop.xlane.xlu0 %986
      %vm988 = vcmp.eq.f32.partialorder %v985, %v987
      %v989 = vsel %vm988, %v984, inf
      %990 = vmin.xlane.f32.xlu0 %v989
      %v991 = vpop.xlane.xlu0 %990
      %v992 = vcvt.f32.s32 %v991
      %v993 = vcvt.f32.s32 %v987
      %v994 = vshll.u32 %v993, 16
      %v995 = vadd.s32 %v994, %v992
      %v996 = vsel %vm573, %v960, 2147483647
      %v997 = vand.u32 %v996, 65535
      %v998 = vshra.s32 %v996, 16
      %v999 = vcvt.s32.f32 %v997
      %v1000 = vcvt.s32.f32 %v998
      %1001 = vmin.xlane.f32.xlu0 %v1000
      %v1002 = vpop.xlane.xlu0 %1001
      %vm1003 = vcmp.eq.f32.partialorder %v1000, %v1002
      %v1004 = vsel %vm1003, %v999, inf
      %1005 = vmin.xlane.f32.xlu0 %v1004
      %v1006 = vpop.xlane.xlu0 %1005
      %v1007 = vcvt.f32.s32 %v1006
      %v1008 = vcvt.f32.s32 %v1002
      %v1009 = vshll.u32 %v1008, 16
      %v1010 = vadd.s32 %v1009, %v1007
      %v1011 = vsel %vm573, %v961, 2147483647
      %v1012 = vand.u32 %v1011, 65535
      %v1013 = vshra.s32 %v1011, 16
      %v1014 = vcvt.s32.f32 %v1012
      %v1015 = vcvt.s32.f32 %v1013
      %1016 = vmin.xlane.f32.xlu0 %v1015
      %v1017 = vpop.xlane.xlu0 %1016
      %vm1018 = vcmp.eq.f32.partialorder %v1015, %v1017
      %v1019 = vsel %vm1018, %v1014, inf
      %1020 = vmin.xlane.f32.xlu0 %v1019
      %v1021 = vpop.xlane.xlu0 %1020
      %v1022 = vcvt.f32.s32 %v1021
      %v1023 = vcvt.f32.s32 %v1017
      %v1024 = vshll.u32 %v1023, 16
      %v1025 = vadd.s32 %v1024, %v1022
      %v1026 = vsel %vm573, %v962, 2147483647
      %v1027 = vand.u32 %v1026, 65535
      %v1028 = vshra.s32 %v1026, 16
      %v1029 = vcvt.s32.f32 %v1027
      %v1030 = vcvt.s32.f32 %v1028
      %1031 = vmin.xlane.f32.xlu0 %v1030
      %v1032 = vpop.xlane.xlu0 %1031
      %vm1033 = vcmp.eq.f32.partialorder %v1030, %v1032
      %v1034 = vsel %vm1033, %v1029, inf
      %1035 = vmin.xlane.f32.xlu0 %v1034
      %v1036 = vpop.xlane.xlu0 %1035
      %v1037 = vcvt.f32.s32 %v1036
      %v1038 = vcvt.f32.s32 %v1032
      %v1039 = vshll.u32 %v1038, 16
      %v1040 = vadd.s32 %v1039, %v1037
      %v1041 = vsel %vm573, %v963, 2147483647
      %v1042 = vand.u32 %v1041, 65535
      %v1043 = vshra.s32 %v1041, 16
      %v1044 = vcvt.s32.f32 %v1042
      %v1045 = vcvt.s32.f32 %v1043
      %1046 = vmin.xlane.f32.xlu0 %v1045
      %v1047 = vpop.xlane.xlu0 %1046
      %vm1048 = vcmp.eq.f32.partialorder %v1045, %v1047
      %v1049 = vsel %vm1048, %v1044, inf
      %1050 = vmin.xlane.f32.xlu0 %v1049
      %v1051 = vpop.xlane.xlu0 %1050
      %v1052 = vcvt.f32.s32 %v1051
      %v1053 = vcvt.f32.s32 %v1047
      %v1054 = vshll.u32 %v1053, 16
      %v1055 = vadd.s32 %v1054, %v1052
      %v1056 = vsel %vm573, %v964, 2147483647
      %v1057 = vand.u32 %v1056, 65535
      %v1058 = vshra.s32 %v1056, 16
      %v1059 = vcvt.s32.f32 %v1057
      %v1060 = vcvt.s32.f32 %v1058
      %1061 = vmin.xlane.f32.xlu0 %v1060
      %v1062 = vpop.xlane.xlu0 %1061
      %vm1063 = vcmp.eq.f32.partialorder %v1060, %v1062
      %v1064 = vsel %vm1063, %v1059, inf
      %1065 = vmin.xlane.f32.xlu0 %v1064
      %v1066 = vpop.xlane.xlu0 %1065
      %v1067 = vcvt.f32.s32 %v1066
      %v1068 = vcvt.f32.s32 %v1062
      %v1069 = vshll.u32 %v1068, 16
      %v1070 = vadd.s32 %v1069, %v1067
      %v1071 = vsel %vm573, %v965, 2147483647
      %v1072 = vand.u32 %v1071, 65535
      %v1073 = vshra.s32 %v1071, 16
      %v1074 = vcvt.s32.f32 %v1072
      %v1075 = vcvt.s32.f32 %v1073
      %1076 = vmin.xlane.f32.xlu0 %v1075
      %v1077 = vpop.xlane.xlu0 %1076
      %vm1078 = vcmp.eq.f32.partialorder %v1075, %v1077
      %v1079 = vsel %vm1078, %v1074, inf
      %1080 = vmin.xlane.f32.xlu0 %v1079
      %v1081 = vpop.xlane.xlu0 %1080
      %v1082 = vcvt.f32.s32 %v1081
      %v1083 = vcvt.f32.s32 %v1077
      %v1084 = vshll.u32 %v1083, 16
      %v1085 = vadd.s32 %v1084, %v1082
      %vm1086 = vcmp.eq.s32.totalorder %v565, %v980
      %vm1087 = vcmp.eq.s32.totalorder %v566, %v995
      %vm1088 = vcmp.eq.s32.totalorder %v567, %v1010
      %vm1089 = vcmp.eq.s32.totalorder %v568, %v1025
      %vm1090 = vcmp.eq.s32.totalorder %v569, %v1040
      %vm1091 = vcmp.eq.s32.totalorder %v570, %v1055
      %vm1092 = vcmp.eq.s32.totalorder %v571, %v1070
      %vm1093 = vcmp.eq.s32.totalorder %v572, %v1085
      %v1094 = vsel %vm1086, inf, %v918
      %v1095 = vsel %vm1087, inf, %v919
      %v1096 = vsel %vm1088, inf, %v920
      %v1097 = vsel %vm1089, inf, %v921
      %v1098 = vsel %vm1090, inf, %v922
      %v1099 = vsel %vm1091, inf, %v923
      %v1100 = vsel %vm1092, inf, %v924
      %v1101 = vsel %vm1093, inf, %v925
      %v1102 = vsel %vm573, %v1094, inf
      %1103 = vmin.xlane.f32.xlu0 %v1102
      %v1104 = vpop.xlane.xlu0 %1103
      %v1105 = vsel %vm573, %v1095, inf
      %1106 = vmin.xlane.f32.xlu0 %v1105
      %v1107 = vpop.xlane.xlu0 %1106
      %v1108 = vsel %vm573, %v1096, inf
      %1109 = vmin.xlane.f32.xlu0 %v1108
      %v1110 = vpop.xlane.xlu0 %1109
      %v1111 = vsel %vm573, %v1097, inf
      %1112 = vmin.xlane.f32.xlu0 %v1111
      %v1113 = vpop.xlane.xlu0 %1112
      %v1114 = vsel %vm573, %v1098, inf
      %1115 = vmin.xlane.f32.xlu0 %v1114
      %v1116 = vpop.xlane.xlu0 %1115
      %v1117 = vsel %vm573, %v1099, inf
      %1118 = vmin.xlane.f32.xlu0 %v1117
      %v1119 = vpop.xlane.xlu0 %1118
      %v1120 = vsel %vm573, %v1100, inf
      %1121 = vmin.xlane.f32.xlu0 %v1120
      %v1122 = vpop.xlane.xlu0 %1121
      %v1123 = vsel %vm573, %v1101, inf
      %1124 = vmin.xlane.f32.xlu0 %v1123
      %v1125 = vpop.xlane.xlu0 %1124
      %vm1126 = vcmp.eq.f32.partialorder %v1094, %v1104
      %vm1127 = vcmp.eq.f32.partialorder %v1095, %v1107
      %vm1128 = vcmp.eq.f32.partialorder %v1096, %v1110
      %vm1129 = vcmp.eq.f32.partialorder %v1097, %v1113
      %vm1130 = vcmp.eq.f32.partialorder %v1098, %v1116
      %vm1131 = vcmp.eq.f32.partialorder %v1099, %v1119
      %vm1132 = vcmp.eq.f32.partialorder %v1100, %v1122
      %vm1133 = vcmp.eq.f32.partialorder %v1101, %v1125
      %v1134 = vsel %vm1126, %v565, 2147483647
      %v1135 = vsel %vm1127, %v566, 2147483647
      %v1136 = vsel %vm1128, %v567, 2147483647
      %v1137 = vsel %vm1129, %v568, 2147483647
      %v1138 = vsel %vm1130, %v569, 2147483647
      %v1139 = vsel %vm1131, %v570, 2147483647
      %v1140 = vsel %vm1132, %v571, 2147483647
      %v1141 = vsel %vm1133, %v572, 2147483647
      %v1142 = vsel %vm573, %v1134, 2147483647
      %v1143 = vand.u32 %v1142, 65535
      %v1144 = vshra.s32 %v1142, 16
      %v1145 = vcvt.s32.f32 %v1143
      %v1146 = vcvt.s32.f32 %v1144
      %1147 = vmin.xlane.f32.xlu0 %v1146
      %v1148 = vpop.xlane.xlu0 %1147
      %vm1149 = vcmp.eq.f32.partialorder %v1146, %v1148
      %v1150 = vsel %vm1149, %v1145, inf
      %1151 = vmin.xlane.f32.xlu0 %v1150
      %v1152 = vpop.xlane.xlu0 %1151
      %v1153 = vcvt.f32.s32 %v1152
      %v1154 = vcvt.f32.s32 %v1148
      %v1155 = vshll.u32 %v1154, 16
      %v1156 = vadd.s32 %v1155, %v1153
      %v1157 = vsel %vm573, %v1135, 2147483647
      %v1158 = vand.u32 %v1157, 65535
      %v1159 = vshra.s32 %v1157, 16
      %v1160 = vcvt.s32.f32 %v1158
      %v1161 = vcvt.s32.f32 %v1159
      %1162 = vmin.xlane.f32.xlu0 %v1161
      %v1163 = vpop.xlane.xlu0 %1162
      %vm1164 = vcmp.eq.f32.partialorder %v1161, %v1163
      %v1165 = vsel %vm1164, %v1160, inf
      %1166 = vmin.xlane.f32.xlu0 %v1165
      %v1167 = vpop.xlane.xlu0 %1166
      %v1168 = vcvt.f32.s32 %v1167
      %v1169 = vcvt.f32.s32 %v1163
      %v1170 = vshll.u32 %v1169, 16
      %v1171 = vadd.s32 %v1170, %v1168
      %v1172 = vsel %vm573, %v1136, 2147483647
      %v1173 = vand.u32 %v1172, 65535
      %v1174 = vshra.s32 %v1172, 16
      %v1175 = vcvt.s32.f32 %v1173
      %v1176 = vcvt.s32.f32 %v1174
      %1177 = vmin.xlane.f32.xlu0 %v1176
      %v1178 = vpop.xlane.xlu0 %1177
      %vm1179 = vcmp.eq.f32.partialorder %v1176, %v1178
      %v1180 = vsel %vm1179, %v1175, inf
      %1181 = vmin.xlane.f32.xlu0 %v1180
      %v1182 = vpop.xlane.xlu0 %1181
      %v1183 = vcvt.f32.s32 %v1182
      %v1184 = vcvt.f32.s32 %v1178
      %v1185 = vshll.u32 %v1184, 16
      %v1186 = vadd.s32 %v1185, %v1183
      %v1187 = vsel %vm573, %v1137, 2147483647
      %v1188 = vand.u32 %v1187, 65535
      %v1189 = vshra.s32 %v1187, 16
      %v1190 = vcvt.s32.f32 %v1188
      %v1191 = vcvt.s32.f32 %v1189
      %1192 = vmin.xlane.f32.xlu0 %v1191
      %v1193 = vpop.xlane.xlu0 %1192
      %vm1194 = vcmp.eq.f32.partialorder %v1191, %v1193
      %v1195 = vsel %vm1194, %v1190, inf
      %1196 = vmin.xlane.f32.xlu0 %v1195
      %v1197 = vpop.xlane.xlu0 %1196
      %v1198 = vcvt.f32.s32 %v1197
      %v1199 = vcvt.f32.s32 %v1193
      %v1200 = vshll.u32 %v1199, 16
      %v1201 = vadd.s32 %v1200, %v1198
      %v1202 = vsel %vm573, %v1138, 2147483647
      %v1203 = vand.u32 %v1202, 65535
      %v1204 = vshra.s32 %v1202, 16
      %v1205 = vcvt.s32.f32 %v1203
      %v1206 = vcvt.s32.f32 %v1204
      %1207 = vmin.xlane.f32.xlu0 %v1206
      %v1208 = vpop.xlane.xlu0 %1207
      %vm1209 = vcmp.eq.f32.partialorder %v1206, %v1208
      %v1210 = vsel %vm1209, %v1205, inf
      %1211 = vmin.xlane.f32.xlu0 %v1210
      %v1212 = vpop.xlane.xlu0 %1211
      %v1213 = vcvt.f32.s32 %v1212
      %v1214 = vcvt.f32.s32 %v1208
      %v1215 = vshll.u32 %v1214, 16
      %v1216 = vadd.s32 %v1215, %v1213
      %v1217 = vsel %vm573, %v1139, 2147483647
      %v1218 = vand.u32 %v1217, 65535
      %v1219 = vshra.s32 %v1217, 16
      %v1220 = vcvt.s32.f32 %v1218
      %v1221 = vcvt.s32.f32 %v1219
      %1222 = vmin.xlane.f32.xlu0 %v1221
      %v1223 = vpop.xlane.xlu0 %1222
      %vm1224 = vcmp.eq.f32.partialorder %v1221, %v1223
      %v1225 = vsel %vm1224, %v1220, inf
      %1226 = vmin.xlane.f32.xlu0 %v1225
      %v1227 = vpop.xlane.xlu0 %1226
      %v1228 = vcvt.f32.s32 %v1227
      %v1229 = vcvt.f32.s32 %v1223
      %v1230 = vshll.u32 %v1229, 16
      %v1231 = vadd.s32 %v1230, %v1228
      %v1232 = vsel %vm573, %v1140, 2147483647
      %v1233 = vand.u32 %v1232, 65535
      %v1234 = vshra.s32 %v1232, 16
      %v1235 = vcvt.s32.f32 %v1233
      %v1236 = vcvt.s32.f32 %v1234
      %1237 = vmin.xlane.f32.xlu0 %v1236
      %v1238 = vpop.xlane.xlu0 %1237
      %vm1239 = vcmp.eq.f32.partialorder %v1236, %v1238
      %v1240 = vsel %vm1239, %v1235, inf
      %1241 = vmin.xlane.f32.xlu0 %v1240
      %v1242 = vpop.xlane.xlu0 %1241
      %v1243 = vcvt.f32.s32 %v1242
      %v1244 = vcvt.f32.s32 %v1238
      %v1245 = vshll.u32 %v1244, 16
      %v1246 = vadd.s32 %v1245, %v1243
      %v1247 = vsel %vm573, %v1141, 2147483647
      %v1248 = vand.u32 %v1247, 65535
      %v1249 = vshra.s32 %v1247, 16
      %v1250 = vcvt.s32.f32 %v1248
      %v1251 = vcvt.s32.f32 %v1249
      %1252 = vmin.xlane.f32.xlu0 %v1251
      %v1253 = vpop.xlane.xlu0 %1252
      %vm1254 = vcmp.eq.f32.partialorder %v1251, %v1253
      %v1255 = vsel %vm1254, %v1250, inf
      %1256 = vmin.xlane.f32.xlu0 %v1255
      %v1257 = vpop.xlane.xlu0 %1256
      %v1258 = vcvt.f32.s32 %v1257
      %v1259 = vcvt.f32.s32 %v1253
      %v1260 = vshll.u32 %v1259, 16
      %v1261 = vadd.s32 %v1260, %v1258
      %vm1262 = vcmp.eq.s32.totalorder %v565, %v1156
      %vm1263 = vcmp.eq.s32.totalorder %v566, %v1171
      %vm1264 = vcmp.eq.s32.totalorder %v567, %v1186
      %vm1265 = vcmp.eq.s32.totalorder %v568, %v1201
      %vm1266 = vcmp.eq.s32.totalorder %v569, %v1216
      %vm1267 = vcmp.eq.s32.totalorder %v570, %v1231
      %vm1268 = vcmp.eq.s32.totalorder %v571, %v1246
      %vm1269 = vcmp.eq.s32.totalorder %v572, %v1261
      %v1270 = vsel %vm1262, inf, %v1094
      %v1271 = vsel %vm1263, inf, %v1095
      %v1272 = vsel %vm1264, inf, %v1096
      %v1273 = vsel %vm1265, inf, %v1097
      %v1274 = vsel %vm1266, inf, %v1098
      %v1275 = vsel %vm1267, inf, %v1099
      %v1276 = vsel %vm1268, inf, %v1100
      %v1277 = vsel %vm1269, inf, %v1101
      %v1278 = vsel %vm573, %v1270, inf
      %1279 = vmin.xlane.f32.xlu0 %v1278
      %v1280 = vpop.xlane.xlu0 %1279
      %v1281 = vsel %vm573, %v1271, inf
      %1282 = vmin.xlane.f32.xlu0 %v1281
      %v1283 = vpop.xlane.xlu0 %1282
      %v1284 = vsel %vm573, %v1272, inf
      %1285 = vmin.xlane.f32.xlu0 %v1284
      %v1286 = vpop.xlane.xlu0 %1285
      %v1287 = vsel %vm573, %v1273, inf
      %1288 = vmin.xlane.f32.xlu0 %v1287
      %v1289 = vpop.xlane.xlu0 %1288
      %v1290 = vsel %vm573, %v1274, inf
      %1291 = vmin.xlane.f32.xlu0 %v1290
      %v1292 = vpop.xlane.xlu0 %1291
      %v1293 = vsel %vm573, %v1275, inf
      %1294 = vmin.xlane.f32.xlu0 %v1293
      %v1295 = vpop.xlane.xlu0 %1294
      %v1296 = vsel %vm573, %v1276, inf
      %1297 = vmin.xlane.f32.xlu0 %v1296
      %v1298 = vpop.xlane.xlu0 %1297
      %v1299 = vsel %vm573, %v1277, inf
      %1300 = vmin.xlane.f32.xlu0 %v1299
      %v1301 = vpop.xlane.xlu0 %1300
      %vm1302 = vcmp.eq.f32.partialorder %v1270, %v1280
      %vm1303 = vcmp.eq.f32.partialorder %v1271, %v1283
      %vm1304 = vcmp.eq.f32.partialorder %v1272, %v1286
      %vm1305 = vcmp.eq.f32.partialorder %v1273, %v1289
      %vm1306 = vcmp.eq.f32.partialorder %v1274, %v1292
      %vm1307 = vcmp.eq.f32.partialorder %v1275, %v1295
      %vm1308 = vcmp.eq.f32.partialorder %v1276, %v1298
      %vm1309 = vcmp.eq.f32.partialorder %v1277, %v1301
      %v1310 = vsel %vm1302, %v565, 2147483647
      %v1311 = vsel %vm1303, %v566, 2147483647
      %v1312 = vsel %vm1304, %v567, 2147483647
      %v1313 = vsel %vm1305, %v568, 2147483647
      %v1314 = vsel %vm1306, %v569, 2147483647
      %v1315 = vsel %vm1307, %v570, 2147483647
      %v1316 = vsel %vm1308, %v571, 2147483647
      %v1317 = vsel %vm1309, %v572, 2147483647
      %v1318 = vsel %vm573, %v1310, 2147483647
      %v1319 = vand.u32 %v1318, 65535
      %v1320 = vshra.s32 %v1318, 16
      %v1321 = vcvt.s32.f32 %v1319
      %v1322 = vcvt.s32.f32 %v1320
      %1323 = vmin.xlane.f32.xlu0 %v1322
      %v1324 = vpop.xlane.xlu0 %1323
      %vm1325 = vcmp.eq.f32.partialorder %v1322, %v1324
      %v1326 = vsel %vm1325, %v1321, inf
      %1327 = vmin.xlane.f32.xlu0 %v1326
      %v1328 = vpop.xlane.xlu0 %1327
      %v1329 = vcvt.f32.s32 %v1328
      %v1330 = vcvt.f32.s32 %v1324
      %v1331 = vshll.u32 %v1330, 16
      %v1332 = vadd.s32 %v1331, %v1329
      %v1333 = vsel %vm573, %v1311, 2147483647
      %v1334 = vand.u32 %v1333, 65535
      %v1335 = vshra.s32 %v1333, 16
      %v1336 = vcvt.s32.f32 %v1334
      %v1337 = vcvt.s32.f32 %v1335
      %1338 = vmin.xlane.f32.xlu0 %v1337
      %v1339 = vpop.xlane.xlu0 %1338
      %vm1340 = vcmp.eq.f32.partialorder %v1337, %v1339
      %v1341 = vsel %vm1340, %v1336, inf
      %1342 = vmin.xlane.f32.xlu0 %v1341
      %v1343 = vpop.xlane.xlu0 %1342
      %v1344 = vcvt.f32.s32 %v1343
      %v1345 = vcvt.f32.s32 %v1339
      %v1346 = vshll.u32 %v1345, 16
      %v1347 = vadd.s32 %v1346, %v1344
      %v1348 = vsel %vm573, %v1312, 2147483647
      %v1349 = vand.u32 %v1348, 65535
      %v1350 = vshra.s32 %v1348, 16
      %v1351 = vcvt.s32.f32 %v1349
      %v1352 = vcvt.s32.f32 %v1350
      %1353 = vmin.xlane.f32.xlu0 %v1352
      %v1354 = vpop.xlane.xlu0 %1353
      %vm1355 = vcmp.eq.f32.partialorder %v1352, %v1354
      %v1356 = vsel %vm1355, %v1351, inf
      %1357 = vmin.xlane.f32.xlu0 %v1356
      %v1358 = vpop.xlane.xlu0 %1357
      %v1359 = vcvt.f32.s32 %v1358
      %v1360 = vcvt.f32.s32 %v1354
      %v1361 = vshll.u32 %v1360, 16
      %v1362 = vadd.s32 %v1361, %v1359
      %v1363 = vsel %vm573, %v1313, 2147483647
      %v1364 = vand.u32 %v1363, 65535
      %v1365 = vshra.s32 %v1363, 16
      %v1366 = vcvt.s32.f32 %v1364
      %v1367 = vcvt.s32.f32 %v1365
      %1368 = vmin.xlane.f32.xlu0 %v1367
      %v1369 = vpop.xlane.xlu0 %1368
      %vm1370 = vcmp.eq.f32.partialorder %v1367, %v1369
      %v1371 = vsel %vm1370, %v1366, inf
      %1372 = vmin.xlane.f32.xlu0 %v1371
      %v1373 = vpop.xlane.xlu0 %1372
      %v1374 = vcvt.f32.s32 %v1373
      %v1375 = vcvt.f32.s32 %v1369
      %v1376 = vshll.u32 %v1375, 16
      %v1377 = vadd.s32 %v1376, %v1374
      %v1378 = vsel %vm573, %v1314, 2147483647
      %v1379 = vand.u32 %v1378, 65535
      %v1380 = vshra.s32 %v1378, 16
      %v1381 = vcvt.s32.f32 %v1379
      %v1382 = vcvt.s32.f32 %v1380
      %1383 = vmin.xlane.f32.xlu0 %v1382
      %v1384 = vpop.xlane.xlu0 %1383
      %vm1385 = vcmp.eq.f32.partialorder %v1382, %v1384
      %v1386 = vsel %vm1385, %v1381, inf
      %1387 = vmin.xlane.f32.xlu0 %v1386
      %v1388 = vpop.xlane.xlu0 %1387
      %v1389 = vcvt.f32.s32 %v1388
      %v1390 = vcvt.f32.s32 %v1384
      %v1391 = vshll.u32 %v1390, 16
      %v1392 = vadd.s32 %v1391, %v1389
      %v1393 = vsel %vm573, %v1315, 2147483647
      %v1394 = vand.u32 %v1393, 65535
      %v1395 = vshra.s32 %v1393, 16
      %v1396 = vcvt.s32.f32 %v1394
      %v1397 = vcvt.s32.f32 %v1395
      %1398 = vmin.xlane.f32.xlu0 %v1397
      %v1399 = vpop.xlane.xlu0 %1398
      %vm1400 = vcmp.eq.f32.partialorder %v1397, %v1399
      %v1401 = vsel %vm1400, %v1396, inf
      %1402 = vmin.xlane.f32.xlu0 %v1401
      %v1403 = vpop.xlane.xlu0 %1402
      %v1404 = vcvt.f32.s32 %v1403
      %v1405 = vcvt.f32.s32 %v1399
      %v1406 = vshll.u32 %v1405, 16
      %v1407 = vadd.s32 %v1406, %v1404
      %v1408 = vsel %vm573, %v1316, 2147483647
      %v1409 = vand.u32 %v1408, 65535
      %v1410 = vshra.s32 %v1408, 16
      %v1411 = vcvt.s32.f32 %v1409
      %v1412 = vcvt.s32.f32 %v1410
      %1413 = vmin.xlane.f32.xlu0 %v1412
      %v1414 = vpop.xlane.xlu0 %1413
      %vm1415 = vcmp.eq.f32.partialorder %v1412, %v1414
      %v1416 = vsel %vm1415, %v1411, inf
      %1417 = vmin.xlane.f32.xlu0 %v1416
      %v1418 = vpop.xlane.xlu0 %1417
      %v1419 = vcvt.f32.s32 %v1418
      %v1420 = vcvt.f32.s32 %v1414
      %v1421 = vshll.u32 %v1420, 16
      %v1422 = vadd.s32 %v1421, %v1419
      %v1423 = vsel %vm573, %v1317, 2147483647
      %v1424 = vand.u32 %v1423, 65535
      %v1425 = vshra.s32 %v1423, 16
      %v1426 = vcvt.s32.f32 %v1424
      %v1427 = vcvt.s32.f32 %v1425
      %1428 = vmin.xlane.f32.xlu0 %v1427
      %v1429 = vpop.xlane.xlu0 %1428
      %vm1430 = vcmp.eq.f32.partialorder %v1427, %v1429
      %v1431 = vsel %vm1430, %v1426, inf
      %1432 = vmin.xlane.f32.xlu0 %v1431
      %v1433 = vpop.xlane.xlu0 %1432
      %v1434 = vcvt.f32.s32 %v1433
      %v1435 = vcvt.f32.s32 %v1429
      %v1436 = vshll.u32 %v1435, 16
      %v1437 = vadd.s32 %v1436, %v1434
      %vm1438 = vcmp.eq.s32.totalorder %v565, %v1332
      %vm1439 = vcmp.eq.s32.totalorder %v566, %v1347
      %vm1440 = vcmp.eq.s32.totalorder %v567, %v1362
      %vm1441 = vcmp.eq.s32.totalorder %v568, %v1377
      %vm1442 = vcmp.eq.s32.totalorder %v569, %v1392
      %vm1443 = vcmp.eq.s32.totalorder %v570, %v1407
      %vm1444 = vcmp.eq.s32.totalorder %v571, %v1422
      %vm1445 = vcmp.eq.s32.totalorder %v572, %v1437
      %v1446 = vsel %vm1438, inf, %v1270
      %v1447 = vsel %vm1439, inf, %v1271
      %v1448 = vsel %vm1440, inf, %v1272
      %v1449 = vsel %vm1441, inf, %v1273
      %v1450 = vsel %vm1442, inf, %v1274
      %v1451 = vsel %vm1443, inf, %v1275
      %v1452 = vsel %vm1444, inf, %v1276
      %v1453 = vsel %vm1445, inf, %v1277
      %v1454 = vsel %vm573, %v1446, inf
      %1455 = vmin.xlane.f32.xlu0 %v1454
      %v1456 = vpop.xlane.xlu0 %1455
      %v1457 = vsel %vm573, %v1447, inf
      %1458 = vmin.xlane.f32.xlu0 %v1457
      %v1459 = vpop.xlane.xlu0 %1458
      %v1460 = vsel %vm573, %v1448, inf
      %1461 = vmin.xlane.f32.xlu0 %v1460
      %v1462 = vpop.xlane.xlu0 %1461
      %v1463 = vsel %vm573, %v1449, inf
      %1464 = vmin.xlane.f32.xlu0 %v1463
      %v1465 = vpop.xlane.xlu0 %1464
      %v1466 = vsel %vm573, %v1450, inf
      %1467 = vmin.xlane.f32.xlu0 %v1466
      %v1468 = vpop.xlane.xlu0 %1467
      %v1469 = vsel %vm573, %v1451, inf
      %1470 = vmin.xlane.f32.xlu0 %v1469
      %v1471 = vpop.xlane.xlu0 %1470
      %v1472 = vsel %vm573, %v1452, inf
      %1473 = vmin.xlane.f32.xlu0 %v1472
      %v1474 = vpop.xlane.xlu0 %1473
      %v1475 = vsel %vm573, %v1453, inf
      %1476 = vmin.xlane.f32.xlu0 %v1475
      %v1477 = vpop.xlane.xlu0 %1476
      %vm1478 = vcmp.eq.f32.partialorder %v1446, %v1456
      %vm1479 = vcmp.eq.f32.partialorder %v1447, %v1459
      %vm1480 = vcmp.eq.f32.partialorder %v1448, %v1462
      %vm1481 = vcmp.eq.f32.partialorder %v1449, %v1465
      %vm1482 = vcmp.eq.f32.partialorder %v1450, %v1468
      %vm1483 = vcmp.eq.f32.partialorder %v1451, %v1471
      %vm1484 = vcmp.eq.f32.partialorder %v1452, %v1474
      %vm1485 = vcmp.eq.f32.partialorder %v1453, %v1477
      %v1486 = vsel %vm1478, %v565, 2147483647
      %v1487 = vsel %vm1479, %v566, 2147483647
      %v1488 = vsel %vm1480, %v567, 2147483647
      %v1489 = vsel %vm1481, %v568, 2147483647
      %v1490 = vsel %vm1482, %v569, 2147483647
      %v1491 = vsel %vm1483, %v570, 2147483647
      %v1492 = vsel %vm1484, %v571, 2147483647
      %v1493 = vsel %vm1485, %v572, 2147483647
      %v1494 = vsel %vm573, %v1486, 2147483647
      %v1495 = vand.u32 %v1494, 65535
      %v1496 = vshra.s32 %v1494, 16
      %v1497 = vcvt.s32.f32 %v1495
      %v1498 = vcvt.s32.f32 %v1496
      %1499 = vmin.xlane.f32.xlu0 %v1498
      %v1500 = vpop.xlane.xlu0 %1499
      %vm1501 = vcmp.eq.f32.partialorder %v1498, %v1500
      %v1502 = vsel %vm1501, %v1497, inf
      %1503 = vmin.xlane.f32.xlu0 %v1502
      %v1504 = vpop.xlane.xlu0 %1503
      %v1505 = vcvt.f32.s32 %v1504
      %v1506 = vcvt.f32.s32 %v1500
      %v1507 = vshll.u32 %v1506, 16
      %v1508 = vadd.s32 %v1507, %v1505
      %v1509 = vsel %vm573, %v1487, 2147483647
      %v1510 = vand.u32 %v1509, 65535
      %v1511 = vshra.s32 %v1509, 16
      %v1512 = vcvt.s32.f32 %v1510
      %v1513 = vcvt.s32.f32 %v1511
      %1514 = vmin.xlane.f32.xlu0 %v1513
      %v1515 = vpop.xlane.xlu0 %1514
      %vm1516 = vcmp.eq.f32.partialorder %v1513, %v1515
      %v1517 = vsel %vm1516, %v1512, inf
      %1518 = vmin.xlane.f32.xlu0 %v1517
      %v1519 = vpop.xlane.xlu0 %1518
      %v1520 = vcvt.f32.s32 %v1519
      %v1521 = vcvt.f32.s32 %v1515
      %v1522 = vshll.u32 %v1521, 16
      %v1523 = vadd.s32 %v1522, %v1520
      %v1524 = vsel %vm573, %v1488, 2147483647
      %v1525 = vand.u32 %v1524, 65535
      %v1526 = vshra.s32 %v1524, 16
      %v1527 = vcvt.s32.f32 %v1525
      %v1528 = vcvt.s32.f32 %v1526
      %1529 = vmin.xlane.f32.xlu0 %v1528
      %v1530 = vpop.xlane.xlu0 %1529
      %vm1531 = vcmp.eq.f32.partialorder %v1528, %v1530
      %v1532 = vsel %vm1531, %v1527, inf
      %1533 = vmin.xlane.f32.xlu0 %v1532
      %v1534 = vpop.xlane.xlu0 %1533
      %v1535 = vcvt.f32.s32 %v1534
      %v1536 = vcvt.f32.s32 %v1530
      %v1537 = vshll.u32 %v1536, 16
      %v1538 = vadd.s32 %v1537, %v1535
      %v1539 = vsel %vm573, %v1489, 2147483647
      %v1540 = vand.u32 %v1539, 65535
      %v1541 = vshra.s32 %v1539, 16
      %v1542 = vcvt.s32.f32 %v1540
      %v1543 = vcvt.s32.f32 %v1541
      %1544 = vmin.xlane.f32.xlu0 %v1543
      %v1545 = vpop.xlane.xlu0 %1544
      %vm1546 = vcmp.eq.f32.partialorder %v1543, %v1545
      %v1547 = vsel %vm1546, %v1542, inf
      %1548 = vmin.xlane.f32.xlu0 %v1547
      %v1549 = vpop.xlane.xlu0 %1548
      %v1550 = vcvt.f32.s32 %v1549
      %v1551 = vcvt.f32.s32 %v1545
      %v1552 = vshll.u32 %v1551, 16
      %v1553 = vadd.s32 %v1552, %v1550
      %v1554 = vsel %vm573, %v1490, 2147483647
      %v1555 = vand.u32 %v1554, 65535
      %v1556 = vshra.s32 %v1554, 16
      %v1557 = vcvt.s32.f32 %v1555
      %v1558 = vcvt.s32.f32 %v1556
      %1559 = vmin.xlane.f32.xlu0 %v1558
      %v1560 = vpop.xlane.xlu0 %1559
      %vm1561 = vcmp.eq.f32.partialorder %v1558, %v1560
      %v1562 = vsel %vm1561, %v1557, inf
      %1563 = vmin.xlane.f32.xlu0 %v1562
      %v1564 = vpop.xlane.xlu0 %1563
      %v1565 = vcvt.f32.s32 %v1564
      %v1566 = vcvt.f32.s32 %v1560
      %v1567 = vshll.u32 %v1566, 16
      %v1568 = vadd.s32 %v1567, %v1565
      %v1569 = vsel %vm573, %v1491, 2147483647
      %v1570 = vand.u32 %v1569, 65535
      %v1571 = vshra.s32 %v1569, 16
      %v1572 = vcvt.s32.f32 %v1570
      %v1573 = vcvt.s32.f32 %v1571
      %1574 = vmin.xlane.f32.xlu0 %v1573
      %v1575 = vpop.xlane.xlu0 %1574
      %vm1576 = vcmp.eq.f32.partialorder %v1573, %v1575
      %v1577 = vsel %vm1576, %v1572, inf
      %1578 = vmin.xlane.f32.xlu0 %v1577
      %v1579 = vpop.xlane.xlu0 %1578
      %v1580 = vcvt.f32.s32 %v1579
      %v1581 = vcvt.f32.s32 %v1575
      %v1582 = vshll.u32 %v1581, 16
      %v1583 = vadd.s32 %v1582, %v1580
      %v1584 = vsel %vm573, %v1492, 2147483647
      %v1585 = vand.u32 %v1584, 65535
      %v1586 = vshra.s32 %v1584, 16
      %v1587 = vcvt.s32.f32 %v1585
      %v1588 = vcvt.s32.f32 %v1586
      %1589 = vmin.xlane.f32.xlu0 %v1588
      %v1590 = vpop.xlane.xlu0 %1589
      %vm1591 = vcmp.eq.f32.partialorder %v1588, %v1590
      %v1592 = vsel %vm1591, %v1587, inf
      %1593 = vmin.xlane.f32.xlu0 %v1592
      %v1594 = vpop.xlane.xlu0 %1593
      %v1595 = vcvt.f32.s32 %v1594
      %v1596 = vcvt.f32.s32 %v1590
      %v1597 = vshll.u32 %v1596, 16
      %v1598 = vadd.s32 %v1597, %v1595
      %v1599 = vsel %vm573, %v1493, 2147483647
      %v1600 = vand.u32 %v1599, 65535
      %v1601 = vshra.s32 %v1599, 16
      %v1602 = vcvt.s32.f32 %v1600
      %v1603 = vcvt.s32.f32 %v1601
      %1604 = vmin.xlane.f32.xlu0 %v1603
      %v1605 = vpop.xlane.xlu0 %1604
      %vm1606 = vcmp.eq.f32.partialorder %v1603, %v1605
      %v1607 = vsel %vm1606, %v1602, inf
      %1608 = vmin.xlane.f32.xlu0 %v1607
      %v1609 = vpop.xlane.xlu0 %1608
      %v1610 = vcvt.f32.s32 %v1609
      %v1611 = vcvt.f32.s32 %v1605
      %v1612 = vshll.u32 %v1611, 16
      %v1613 = vadd.s32 %v1612, %v1610
      %vm1614 = vcmp.eq.s32.totalorder %v565, %v1508
      %vm1615 = vcmp.eq.s32.totalorder %v566, %v1523
      %vm1616 = vcmp.eq.s32.totalorder %v567, %v1538
      %vm1617 = vcmp.eq.s32.totalorder %v568, %v1553
      %vm1618 = vcmp.eq.s32.totalorder %v569, %v1568
      %vm1619 = vcmp.eq.s32.totalorder %v570, %v1583
      %vm1620 = vcmp.eq.s32.totalorder %v571, %v1598
      %vm1621 = vcmp.eq.s32.totalorder %v572, %v1613
      %v1622 = vsel %vm1614, inf, %v1446
      %v1623 = vsel %vm1615, inf, %v1447
      %v1624 = vsel %vm1616, inf, %v1448
      %v1625 = vsel %vm1617, inf, %v1449
      %v1626 = vsel %vm1618, inf, %v1450
      %v1627 = vsel %vm1619, inf, %v1451
      %v1628 = vsel %vm1620, inf, %v1452
      %v1629 = vsel %vm1621, inf, %v1453
      %v1630 = vsel %vm573, %v1622, inf
      %1631 = vmin.xlane.f32.xlu0 %v1630
      %v1632 = vpop.xlane.xlu0 %1631
      %v1633 = vsel %vm573, %v1623, inf
      %1634 = vmin.xlane.f32.xlu0 %v1633
      %v1635 = vpop.xlane.xlu0 %1634
      %v1636 = vsel %vm573, %v1624, inf
      %1637 = vmin.xlane.f32.xlu0 %v1636
      %v1638 = vpop.xlane.xlu0 %1637
      %v1639 = vsel %vm573, %v1625, inf
      %1640 = vmin.xlane.f32.xlu0 %v1639
      %v1641 = vpop.xlane.xlu0 %1640
      %v1642 = vsel %vm573, %v1626, inf
      %1643 = vmin.xlane.f32.xlu0 %v1642
      %v1644 = vpop.xlane.xlu0 %1643
      %v1645 = vsel %vm573, %v1627, inf
      %1646 = vmin.xlane.f32.xlu0 %v1645
      %v1647 = vpop.xlane.xlu0 %1646
      %v1648 = vsel %vm573, %v1628, inf
      %1649 = vmin.xlane.f32.xlu0 %v1648
      %v1650 = vpop.xlane.xlu0 %1649
      %v1651 = vsel %vm573, %v1629, inf
      %1652 = vmin.xlane.f32.xlu0 %v1651
      %v1653 = vpop.xlane.xlu0 %1652
      %vm1654 = vcmp.eq.f32.partialorder %v1622, %v1632
      %vm1655 = vcmp.eq.f32.partialorder %v1623, %v1635
      %vm1656 = vcmp.eq.f32.partialorder %v1624, %v1638
      %vm1657 = vcmp.eq.f32.partialorder %v1625, %v1641
      %vm1658 = vcmp.eq.f32.partialorder %v1626, %v1644
      %vm1659 = vcmp.eq.f32.partialorder %v1627, %v1647
      %vm1660 = vcmp.eq.f32.partialorder %v1628, %v1650
      %vm1661 = vcmp.eq.f32.partialorder %v1629, %v1653
      %v1662 = vsel %vm1654, %v565, 2147483647
      %v1663 = vsel %vm1655, %v566, 2147483647
      %v1664 = vsel %vm1656, %v567, 2147483647
      %v1665 = vsel %vm1657, %v568, 2147483647
      %v1666 = vsel %vm1658, %v569, 2147483647
      %v1667 = vsel %vm1659, %v570, 2147483647
      %v1668 = vsel %vm1660, %v571, 2147483647
      %v1669 = vsel %vm1661, %v572, 2147483647
      %v1670 = vsel %vm573, %v1662, 2147483647
      %v1671 = vand.u32 %v1670, 65535
      %v1672 = vshra.s32 %v1670, 16
      %v1673 = vcvt.s32.f32 %v1671
      %v1674 = vcvt.s32.f32 %v1672
      %1675 = vmin.xlane.f32.xlu0 %v1674
      %v1676 = vpop.xlane.xlu0 %1675
      %vm1677 = vcmp.eq.f32.partialorder %v1674, %v1676
      %v1678 = vsel %vm1677, %v1673, inf
      %1679 = vmin.xlane.f32.xlu0 %v1678
      %v1680 = vpop.xlane.xlu0 %1679
      %v1681 = vcvt.f32.s32 %v1680
      %v1682 = vcvt.f32.s32 %v1676
      %v1683 = vshll.u32 %v1682, 16
      %v1684 = vadd.s32 %v1683, %v1681
      %v1685 = vsel %vm573, %v1663, 2147483647
      %v1686 = vand.u32 %v1685, 65535
      %v1687 = vshra.s32 %v1685, 16
      %v1688 = vcvt.s32.f32 %v1686
      %v1689 = vcvt.s32.f32 %v1687
      %1690 = vmin.xlane.f32.xlu0 %v1689
      %v1691 = vpop.xlane.xlu0 %1690
      %vm1692 = vcmp.eq.f32.partialorder %v1689, %v1691
      %v1693 = vsel %vm1692, %v1688, inf
      %1694 = vmin.xlane.f32.xlu0 %v1693
      %v1695 = vpop.xlane.xlu0 %1694
      %v1696 = vcvt.f32.s32 %v1695
      %v1697 = vcvt.f32.s32 %v1691
      %v1698 = vshll.u32 %v1697, 16
      %v1699 = vadd.s32 %v1698, %v1696
      %v1700 = vsel %vm573, %v1664, 2147483647
      %v1701 = vand.u32 %v1700, 65535
      %v1702 = vshra.s32 %v1700, 16
      %v1703 = vcvt.s32.f32 %v1701
      %v1704 = vcvt.s32.f32 %v1702
      %1705 = vmin.xlane.f32.xlu0 %v1704
      %v1706 = vpop.xlane.xlu0 %1705
      %vm1707 = vcmp.eq.f32.partialorder %v1704, %v1706
      %v1708 = vsel %vm1707, %v1703, inf
      %1709 = vmin.xlane.f32.xlu0 %v1708
      %v1710 = vpop.xlane.xlu0 %1709
      %v1711 = vcvt.f32.s32 %v1710
      %v1712 = vcvt.f32.s32 %v1706
      %v1713 = vshll.u32 %v1712, 16
      %v1714 = vadd.s32 %v1713, %v1711
      %v1715 = vsel %vm573, %v1665, 2147483647
      %v1716 = vand.u32 %v1715, 65535
      %v1717 = vshra.s32 %v1715, 16
      %v1718 = vcvt.s32.f32 %v1716
      %v1719 = vcvt.s32.f32 %v1717
      %1720 = vmin.xlane.f32.xlu0 %v1719
      %v1721 = vpop.xlane.xlu0 %1720
      %vm1722 = vcmp.eq.f32.partialorder %v1719, %v1721
      %v1723 = vsel %vm1722, %v1718, inf
      %1724 = vmin.xlane.f32.xlu0 %v1723
      %v1725 = vpop.xlane.xlu0 %1724
      %v1726 = vcvt.f32.s32 %v1725
      %v1727 = vcvt.f32.s32 %v1721
      %v1728 = vshll.u32 %v1727, 16
      %v1729 = vadd.s32 %v1728, %v1726
      %v1730 = vsel %vm573, %v1666, 2147483647
      %v1731 = vand.u32 %v1730, 65535
      %v1732 = vshra.s32 %v1730, 16
      %v1733 = vcvt.s32.f32 %v1731
      %v1734 = vcvt.s32.f32 %v1732
      %1735 = vmin.xlane.f32.xlu0 %v1734
      %v1736 = vpop.xlane.xlu0 %1735
      %vm1737 = vcmp.eq.f32.partialorder %v1734, %v1736
      %v1738 = vsel %vm1737, %v1733, inf
      %1739 = vmin.xlane.f32.xlu0 %v1738
      %v1740 = vpop.xlane.xlu0 %1739
      %v1741 = vcvt.f32.s32 %v1740
      %v1742 = vcvt.f32.s32 %v1736
      %v1743 = vshll.u32 %v1742, 16
      %v1744 = vadd.s32 %v1743, %v1741
      %v1745 = vsel %vm573, %v1667, 2147483647
      %v1746 = vand.u32 %v1745, 65535
      %v1747 = vshra.s32 %v1745, 16
      %v1748 = vcvt.s32.f32 %v1746
      %v1749 = vcvt.s32.f32 %v1747
      %1750 = vmin.xlane.f32.xlu0 %v1749
      %v1751 = vpop.xlane.xlu0 %1750
      %vm1752 = vcmp.eq.f32.partialorder %v1749, %v1751
      %v1753 = vsel %vm1752, %v1748, inf
      %1754 = vmin.xlane.f32.xlu0 %v1753
      %v1755 = vpop.xlane.xlu0 %1754
      %v1756 = vcvt.f32.s32 %v1755
      %v1757 = vcvt.f32.s32 %v1751
      %v1758 = vshll.u32 %v1757, 16
      %v1759 = vadd.s32 %v1758, %v1756
      %v1760 = vsel %vm573, %v1668, 2147483647
      %v1761 = vand.u32 %v1760, 65535
      %v1762 = vshra.s32 %v1760, 16
      %v1763 = vcvt.s32.f32 %v1761
      %v1764 = vcvt.s32.f32 %v1762
      %1765 = vmin.xlane.f32.xlu0 %v1764
      %v1766 = vpop.xlane.xlu0 %1765
      %vm1767 = vcmp.eq.f32.partialorder %v1764, %v1766
      %v1768 = vsel %vm1767, %v1763, inf
      %1769 = vmin.xlane.f32.xlu0 %v1768
      %v1770 = vpop.xlane.xlu0 %1769
      %v1771 = vcvt.f32.s32 %v1770
      %v1772 = vcvt.f32.s32 %v1766
      %v1773 = vshll.u32 %v1772, 16
      %v1774 = vadd.s32 %v1773, %v1771
      %v1775 = vsel %vm573, %v1669, 2147483647
      %v1776 = vand.u32 %v1775, 65535
      %v1777 = vshra.s32 %v1775, 16
      %v1778 = vcvt.s32.f32 %v1776
      %v1779 = vcvt.s32.f32 %v1777
      %1780 = vmin.xlane.f32.xlu0 %v1779
      %v1781 = vpop.xlane.xlu0 %1780
      %vm1782 = vcmp.eq.f32.partialorder %v1779, %v1781
      %v1783 = vsel %vm1782, %v1778, inf
      %1784 = vmin.xlane.f32.xlu0 %v1783
      %v1785 = vpop.xlane.xlu0 %1784
      %v1786 = vcvt.f32.s32 %v1785
      %v1787 = vcvt.f32.s32 %v1781
      %v1788 = vshll.u32 %v1787, 16
      %v1789 = vadd.s32 %v1788, %v1786
      %vm1790 = vcmp.eq.s32.totalorder %v565, %v1684
      %vm1791 = vcmp.eq.s32.totalorder %v566, %v1699
      %vm1792 = vcmp.eq.s32.totalorder %v567, %v1714
      %vm1793 = vcmp.eq.s32.totalorder %v568, %v1729
      %vm1794 = vcmp.eq.s32.totalorder %v569, %v1744
      %vm1795 = vcmp.eq.s32.totalorder %v570, %v1759
      %vm1796 = vcmp.eq.s32.totalorder %v571, %v1774
      %vm1797 = vcmp.eq.s32.totalorder %v572, %v1789
      %v1798 = vsel %vm1790, inf, %v1622
      %v1799 = vsel %vm1791, inf, %v1623
      %v1800 = vsel %vm1792, inf, %v1624
      %v1801 = vsel %vm1793, inf, %v1625
      %v1802 = vsel %vm1794, inf, %v1626
      %v1803 = vsel %vm1795, inf, %v1627
      %v1804 = vsel %vm1796, inf, %v1628
      %v1805 = vsel %vm1797, inf, %v1629
      %v1806 = vsel %vm573, %v1798, inf
      %1807 = vmin.xlane.f32.xlu0 %v1806
      %v1808 = vpop.xlane.xlu0 %1807
      %v1809 = vsel %vm573, %v1799, inf
      %1810 = vmin.xlane.f32.xlu0 %v1809
      %v1811 = vpop.xlane.xlu0 %1810
      %v1812 = vsel %vm573, %v1800, inf
      %1813 = vmin.xlane.f32.xlu0 %v1812
      %v1814 = vpop.xlane.xlu0 %1813
      %v1815 = vsel %vm573, %v1801, inf
      %1816 = vmin.xlane.f32.xlu0 %v1815
      %v1817 = vpop.xlane.xlu0 %1816
      %v1818 = vsel %vm573, %v1802, inf
      %1819 = vmin.xlane.f32.xlu0 %v1818
      %v1820 = vpop.xlane.xlu0 %1819
      %v1821 = vsel %vm573, %v1803, inf
      %1822 = vmin.xlane.f32.xlu0 %v1821
      %v1823 = vpop.xlane.xlu0 %1822
      %v1824 = vsel %vm573, %v1804, inf
      %1825 = vmin.xlane.f32.xlu0 %v1824
      %v1826 = vpop.xlane.xlu0 %1825
      %v1827 = vsel %vm573, %v1805, inf
      %1828 = vmin.xlane.f32.xlu0 %v1827
      %v1829 = vpop.xlane.xlu0 %1828
      %vm1830 = vcmp.eq.f32.partialorder %v1798, %v1808
      %vm1831 = vcmp.eq.f32.partialorder %v1799, %v1811
      %vm1832 = vcmp.eq.f32.partialorder %v1800, %v1814
      %vm1833 = vcmp.eq.f32.partialorder %v1801, %v1817
      %vm1834 = vcmp.eq.f32.partialorder %v1802, %v1820
      %vm1835 = vcmp.eq.f32.partialorder %v1803, %v1823
      %vm1836 = vcmp.eq.f32.partialorder %v1804, %v1826
      %vm1837 = vcmp.eq.f32.partialorder %v1805, %v1829
      %v1838 = vsel %vm1830, %v565, 2147483647
      %v1839 = vsel %vm1831, %v566, 2147483647
      %v1840 = vsel %vm1832, %v567, 2147483647
      %v1841 = vsel %vm1833, %v568, 2147483647
      %v1842 = vsel %vm1834, %v569, 2147483647
      %v1843 = vsel %vm1835, %v570, 2147483647
      %v1844 = vsel %vm1836, %v571, 2147483647
      %v1845 = vsel %vm1837, %v572, 2147483647
      %v1846 = vsel %vm573, %v1838, 2147483647
      %v1847 = vand.u32 %v1846, 65535
      %v1848 = vshra.s32 %v1846, 16
      %v1849 = vcvt.s32.f32 %v1847
      %v1850 = vcvt.s32.f32 %v1848
      %1851 = vmin.xlane.f32.xlu0 %v1850
      %v1852 = vpop.xlane.xlu0 %1851
      %vm1853 = vcmp.eq.f32.partialorder %v1850, %v1852
      %v1854 = vsel %vm1853, %v1849, inf
      %1855 = vmin.xlane.f32.xlu0 %v1854
      %v1856 = vpop.xlane.xlu0 %1855
      %v1857 = vcvt.f32.s32 %v1856
      %v1858 = vcvt.f32.s32 %v1852
      %v1859 = vshll.u32 %v1858, 16
      %v1860 = vadd.s32 %v1859, %v1857
      %v1861 = vsel %vm573, %v1839, 2147483647
      %v1862 = vand.u32 %v1861, 65535
      %v1863 = vshra.s32 %v1861, 16
      %v1864 = vcvt.s32.f32 %v1862
      %v1865 = vcvt.s32.f32 %v1863
      %1866 = vmin.xlane.f32.xlu0 %v1865
      %v1867 = vpop.xlane.xlu0 %1866
      %vm1868 = vcmp.eq.f32.partialorder %v1865, %v1867
      %v1869 = vsel %vm1868, %v1864, inf
      %1870 = vmin.xlane.f32.xlu0 %v1869
      %v1871 = vpop.xlane.xlu0 %1870
      %v1872 = vcvt.f32.s32 %v1871
      %v1873 = vcvt.f32.s32 %v1867
      %v1874 = vshll.u32 %v1873, 16
      %v1875 = vadd.s32 %v1874, %v1872
      %v1876 = vsel %vm573, %v1840, 2147483647
      %v1877 = vand.u32 %v1876, 65535
      %v1878 = vshra.s32 %v1876, 16
      %v1879 = vcvt.s32.f32 %v1877
      %v1880 = vcvt.s32.f32 %v1878
      %1881 = vmin.xlane.f32.xlu0 %v1880
      %v1882 = vpop.xlane.xlu0 %1881
      %vm1883 = vcmp.eq.f32.partialorder %v1880, %v1882
      %v1884 = vsel %vm1883, %v1879, inf
      %1885 = vmin.xlane.f32.xlu0 %v1884
      %v1886 = vpop.xlane.xlu0 %1885
      %v1887 = vcvt.f32.s32 %v1886
      %v1888 = vcvt.f32.s32 %v1882
      %v1889 = vshll.u32 %v1888, 16
      %v1890 = vadd.s32 %v1889, %v1887
      %v1891 = vsel %vm573, %v1841, 2147483647
      %v1892 = vand.u32 %v1891, 65535
      %v1893 = vshra.s32 %v1891, 16
      %v1894 = vcvt.s32.f32 %v1892
      %v1895 = vcvt.s32.f32 %v1893
      %1896 = vmin.xlane.f32.xlu0 %v1895
      %v1897 = vpop.xlane.xlu0 %1896
      %vm1898 = vcmp.eq.f32.partialorder %v1895, %v1897
      %v1899 = vsel %vm1898, %v1894, inf
      %1900 = vmin.xlane.f32.xlu0 %v1899
      %v1901 = vpop.xlane.xlu0 %1900
      %v1902 = vcvt.f32.s32 %v1901
      %v1903 = vcvt.f32.s32 %v1897
      %v1904 = vshll.u32 %v1903, 16
      %v1905 = vadd.s32 %v1904, %v1902
      %v1906 = vsel %vm573, %v1842, 2147483647
      %v1907 = vand.u32 %v1906, 65535
      %v1908 = vshra.s32 %v1906, 16
      %v1909 = vcvt.s32.f32 %v1907
      %v1910 = vcvt.s32.f32 %v1908
      %1911 = vmin.xlane.f32.xlu0 %v1910
      %v1912 = vpop.xlane.xlu0 %1911
      %vm1913 = vcmp.eq.f32.partialorder %v1910, %v1912
      %v1914 = vsel %vm1913, %v1909, inf
      %1915 = vmin.xlane.f32.xlu0 %v1914
      %v1916 = vpop.xlane.xlu0 %1915
      %v1917 = vcvt.f32.s32 %v1916
      %v1918 = vcvt.f32.s32 %v1912
      %v1919 = vshll.u32 %v1918, 16
      %v1920 = vadd.s32 %v1919, %v1917
      %v1921 = vsel %vm573, %v1843, 2147483647
      %v1922 = vand.u32 %v1921, 65535
      %v1923 = vshra.s32 %v1921, 16
      %v1924 = vcvt.s32.f32 %v1922
      %v1925 = vcvt.s32.f32 %v1923
      %1926 = vmin.xlane.f32.xlu0 %v1925
      %v1927 = vpop.xlane.xlu0 %1926
      %vm1928 = vcmp.eq.f32.partialorder %v1925, %v1927
      %v1929 = vsel %vm1928, %v1924, inf
      %1930 = vmin.xlane.f32.xlu0 %v1929
      %v1931 = vpop.xlane.xlu0 %1930
      %v1932 = vcvt.f32.s32 %v1931
      %v1933 = vcvt.f32.s32 %v1927
      %v1934 = vshll.u32 %v1933, 16
      %v1935 = vadd.s32 %v1934, %v1932
      %v1936 = vsel %vm573, %v1844, 2147483647
      %v1937 = vand.u32 %v1936, 65535
      %v1938 = vshra.s32 %v1936, 16
      %v1939 = vcvt.s32.f32 %v1937
      %v1940 = vcvt.s32.f32 %v1938
      %1941 = vmin.xlane.f32.xlu0 %v1940
      %v1942 = vpop.xlane.xlu0 %1941
      %vm1943 = vcmp.eq.f32.partialorder %v1940, %v1942
      %v1944 = vsel %vm1943, %v1939, inf
      %1945 = vmin.xlane.f32.xlu0 %v1944
      %v1946 = vpop.xlane.xlu0 %1945
      %v1947 = vcvt.f32.s32 %v1946
      %v1948 = vcvt.f32.s32 %v1942
      %v1949 = vshll.u32 %v1948, 16
      %v1950 = vadd.s32 %v1949, %v1947
      %v1951 = vsel %vm573, %v1845, 2147483647
      %v1952 = vand.u32 %v1951, 65535
      %v1953 = vshra.s32 %v1951, 16
      %v1954 = vcvt.s32.f32 %v1952
      %v1955 = vcvt.s32.f32 %v1953
      %1956 = vmin.xlane.f32.xlu0 %v1955
      %v1957 = vpop.xlane.xlu0 %1956
      %vm1958 = vcmp.eq.f32.partialorder %v1955, %v1957
      %v1959 = vsel %vm1958, %v1954, inf
      %1960 = vmin.xlane.f32.xlu0 %v1959
      %v1961 = vpop.xlane.xlu0 %1960
      %v1962 = vcvt.f32.s32 %v1961
      %v1963 = vcvt.f32.s32 %v1957
      %v1964 = vshll.u32 %v1963, 16
      %v1965 = vadd.s32 %v1964, %v1962
      %vm1966 = vcmask 7168
      %v1967 = vsel %vm1966, %v576, %v752
      %v1968 = vsel %vm1966, %v579, %v755
      %v1969 = vsel %vm1966, %v582, %v758
      %v1970 = vsel %vm1966, %v585, %v761
      %v1971 = vsel %vm1966, %v588, %v764
      %v1972 = vsel %vm1966, %v591, %v767
      %v1973 = vsel %vm1966, %v594, %v770
      %v1974 = vsel %vm1966, %v597, %v773
      %vm1975 = vcmask 15360
      %v1976 = vsel %vm1975, %v1967, %v928
      %v1977 = vsel %vm1975, %v1968, %v931
      %v1978 = vsel %vm1975, %v1969, %v934
      %v1979 = vsel %vm1975, %v1970, %v937
      %v1980 = vsel %vm1975, %v1971, %v940
      %v1981 = vsel %vm1975, %v1972, %v943
      %v1982 = vsel %vm1975, %v1973, %v946
      %v1983 = vsel %vm1975, %v1974, %v949
      %v1984 = vsel %vm315, %v1976, %v1104
      %v1985 = vsel %vm315, %v1977, %v1107
      %v1986 = vsel %vm315, %v1978, %v1110
      %v1987 = vsel %vm315, %v1979, %v1113
      %v1988 = vsel %vm315, %v1980, %v1116
      %v1989 = vsel %vm315, %v1981, %v1119
      %v1990 = vsel %vm315, %v1982, %v1122
      %v1991 = vsel %vm315, %v1983, %v1125
      %vm1992 = vcmask 31744
      %v1993 = vsel %vm1992, %v1984, %v1280
      %v1994 = vsel %vm1992, %v1985, %v1283
      %v1995 = vsel %vm1992, %v1986, %v1286
      %v1996 = vsel %vm1992, %v1987, %v1289
      %v1997 = vsel %vm1992, %v1988, %v1292
      %v1998 = vsel %vm1992, %v1989, %v1295
      %v1999 = vsel %vm1992, %v1990, %v1298
      %v2000 = vsel %vm1992, %v1991, %v1301
      %vm2001 = vcmask 39936
      %v2002 = vsel %vm2001, %v1993, %v1456
      %v2003 = vsel %vm2001, %v1994, %v1459
      %v2004 = vsel %vm2001, %v1995, %v1462
      %v2005 = vsel %vm2001, %v1996, %v1465
      %v2006 = vsel %vm2001, %v1997, %v1468
      %v2007 = vsel %vm2001, %v1998, %v1471
      %v2008 = vsel %vm2001, %v1999, %v1474
      %v2009 = vsel %vm2001, %v2000, %v1477
      %vm2010 = vcmask 48128
      %v2011 = vsel %vm2010, %v2002, %v1632
      %v2012 = vsel %vm2010, %v2003, %v1635
      %v2013 = vsel %vm2010, %v2004, %v1638
      %v2014 = vsel %vm2010, %v2005, %v1641
      %v2015 = vsel %vm2010, %v2006, %v1644
      %v2016 = vsel %vm2010, %v2007, %v1647
      %v2017 = vsel %vm2010, %v2008, %v1650
      %v2018 = vsel %vm2010, %v2009, %v1653
      %vm2019 = vcmask 56320
      %v2020 = vsel %vm2019, %v2011, %v1808
      %v2021 = vsel %vm2019, %v2012, %v1811
      %v2022 = vsel %vm2019, %v2013, %v1814
      %v2023 = vsel %vm2019, %v2014, %v1817
      %v2024 = vsel %vm2019, %v2015, %v1820
      %v2025 = vsel %vm2019, %v2016, %v1823
      %v2026 = vsel %vm2019, %v2017, %v1826
      %v2027 = vsel %vm2019, %v2018, %v1829
      %2028 = vst.msk [vmem:[#allocation2] sm:$0xff] %vm546, %v2020
      %2029 = vst.msk [vmem:[#allocation2 + $0x8] sm:$0xff] %vm546, %v2021
      %2030 = vst.msk [vmem:[#allocation2 + $0x10] sm:$0xff] %vm546, %v2022
      %2031 = vst.msk [vmem:[#allocation2 + $0x18] sm:$0xff] %vm546, %v2023
      %2032 = vst.msk [vmem:[#allocation2 + $0x20] sm:$0xff] %vm546, %v2024
      %2033 = vst.msk [vmem:[#allocation2 + $0x28] sm:$0xff] %vm546, %v2025
      %2034 = vst.msk [vmem:[#allocation2 + $0x30] sm:$0xff] %vm546, %v2026
      %2035 = vst.msk [vmem:[#allocation2 + $0x38] sm:$0xff] %vm546, %v2027
      %v2036 = vsel %vm1966, %v628, %v804
      %v2037 = vsel %vm1966, %v643, %v819
      %v2038 = vsel %vm1966, %v658, %v834
      %v2039 = vsel %vm1966, %v673, %v849
      %v2040 = vsel %vm1966, %v688, %v864
      %v2041 = vsel %vm1966, %v703, %v879
      %v2042 = vsel %vm1966, %v718, %v894
      %v2043 = vsel %vm1966, %v733, %v909
      %v2044 = vsel %vm1975, %v2036, %v980
      %v2045 = vsel %vm1975, %v2037, %v995
      %v2046 = vsel %vm1975, %v2038, %v1010
      %v2047 = vsel %vm1975, %v2039, %v1025
      %v2048 = vsel %vm1975, %v2040, %v1040
      %v2049 = vsel %vm1975, %v2041, %v1055
      %v2050 = vsel %vm1975, %v2042, %v1070
      %v2051 = vsel %vm1975, %v2043, %v1085
      %v2052 = vsel %vm315, %v2044, %v1156
      %v2053 = vsel %vm315, %v2045, %v1171
      %v2054 = vsel %vm315, %v2046, %v1186
      %v2055 = vsel %vm315, %v2047, %v1201
      %v2056 = vsel %vm315, %v2048, %v1216
      %v2057 = vsel %vm315, %v2049, %v1231
      %v2058 = vsel %vm315, %v2050, %v1246
      %v2059 = vsel %vm315, %v2051, %v1261
      %v2060 = vsel %vm1992, %v2052, %v1332
      %v2061 = vsel %vm1992, %v2053, %v1347
      %v2062 = vsel %vm1992, %v2054, %v1362
      %v2063 = vsel %vm1992, %v2055, %v1377
      %v2064 = vsel %vm1992, %v2056, %v1392
      %v2065 = vsel %vm1992, %v2057, %v1407
      %v2066 = vsel %vm1992, %v2058, %v1422
      %v2067 = vsel %vm1992, %v2059, %v1437
      %v2068 = vsel %vm2001, %v2060, %v1508
      %v2069 = vsel %vm2001, %v2061, %v1523
      %v2070 = vsel %vm2001, %v2062, %v1538
      %v2071 = vsel %vm2001, %v2063, %v1553
      %v2072 = vsel %vm2001, %v2064, %v1568
      %v2073 = vsel %vm2001, %v2065, %v1583
      %v2074 = vsel %vm2001, %v2066, %v1598
      %v2075 = vsel %vm2001, %v2067, %v1613
      %v2076 = vsel %vm2010, %v2068, %v1684
      %v2077 = vsel %vm2010, %v2069, %v1699
      %v2078 = vsel %vm2010, %v2070, %v1714
      %v2079 = vsel %vm2010, %v2071, %v1729
      %v2080 = vsel %vm2010, %v2072, %v1744
      %v2081 = vsel %vm2010, %v2073, %v1759
      %v2082 = vsel %vm2010, %v2074, %v1774
      %v2083 = vsel %vm2010, %v2075, %v1789
      %v2084 = vsel %vm2019, %v2076, %v1860
      %v2085 = vsel %vm2019, %v2077, %v1875
      %v2086 = vsel %vm2019, %v2078, %v1890
      %v2087 = vsel %vm2019, %v2079, %v1905
      %v2088 = vsel %vm2019, %v2080, %v1920
      %v2089 = vsel %vm2019, %v2081, %v1935
      %v2090 = vsel %vm2019, %v2082, %v1950
      %v2091 = vsel %vm2019, %v2083, %v1965
      %2092 = vst.msk [vmem:[#allocation3] sm:$0xff] %vm546, %v2084
      %2093 = vst.msk [vmem:[#allocation3 + $0x8] sm:$0xff] %vm546, %v2085
      %2094 = vst.msk [vmem:[#allocation3 + $0x10] sm:$0xff] %vm546, %v2086
      %2095 = vst.msk [vmem:[#allocation3 + $0x18] sm:$0xff] %vm546, %v2087
      %2096 = vst.msk [vmem:[#allocation3 + $0x20] sm:$0xff] %vm546, %v2088
      %2097 = vst.msk [vmem:[#allocation3 + $0x28] sm:$0xff] %vm546, %v2089
      %2098 = vst.msk [vmem:[#allocation3 + $0x30] sm:$0xff] %vm546, %v2090
      %2099 = vst.msk [vmem:[#allocation3 + $0x38] sm:$0xff] %vm546, %v2091
      // Predicated region
      $region37: #{tpu_custom_call.1} parent=31 // pred_check
        %p2100 = pneg %p278
      $region38: #{tpu_custom_call.1} parent=31 // pred_check_branch
        %2102 = sbr.rel (%p2100) target = $region40
      $region39: #{tpu_custom_call.1} parent=31 // pred_region
        %v2103 = vld [vmem:[#allocation3] sm:$0xff]
        %v2104 = vld [vmem:[#allocation3 + $0x8] sm:$0xff]
        %v2105 = vld [vmem:[#allocation3 + $0x10] sm:$0xff]
        %v2106 = vld [vmem:[#allocation3 + $0x18] sm:$0xff]
        %v2107 = vld [vmem:[#allocation3 + $0x20] sm:$0xff]
        %v2108 = vld [vmem:[#allocation3 + $0x28] sm:$0xff]
        %v2109 = vld [vmem:[#allocation3 + $0x30] sm:$0xff]
        %v2110 = vld [vmem:[#allocation3 + $0x38] sm:$0xff]
        %2111 = vst.msk [vmem:[%s276] sm:$0xff] %vm546, %v2103
        %2112 = vst.msk [vmem:[%s276 + $0x8] sm:$0xff] %vm546, %v2104
        %2113 = vst.msk [vmem:[%s276 + $0x10] sm:$0xff] %vm546, %v2105
        %2114 = vst.msk [vmem:[%s276 + $0x18] sm:$0xff] %vm546, %v2106
        %2115 = vst.msk [vmem:[%s276 + $0x20] sm:$0xff] %vm546, %v2107
        %2116 = vst.msk [vmem:[%s276 + $0x28] sm:$0xff] %vm546, %v2108
        %2117 = vst.msk [vmem:[%s276 + $0x30] sm:$0xff] %vm546, %v2109
        %2118 = vst.msk [vmem:[%s276 + $0x38] sm:$0xff] %vm546, %v2110
      $region40: #{tpu_custom_call.1} parent=31 // pred_fallthru
        _
      %s2119 = smul.u32 8, %s20
      %p2120 = scmp.lt.s32.totalorder %s19, 1
      %s2121 = scalar_select %p2120, %s19, 1
      %p2122 = scmp.lt.s32.totalorder %s2119, 7
      %s2123 = scalar_select %p2122, %s2119, 7
      %s2124 = smul.addr %s2121, 8
      %s2125 = sadd.s32 %s2123, %s2124
      %s2126 = smul.addr %s2125, 8
      %s2127 = scalar_lea.vmem %s3, %s2126
      // Predicated region
      $region41: #{tpu_custom_call.1} parent=31 // pred_check
        %p2128 = pneg %p137
      $region42: #{tpu_custom_call.1} parent=31 // pred_check_branch
        %2130 = sbr.rel (%p2128) target = $region44
      $region43: #{tpu_custom_call.1} parent=31 // pred_region
        %s2131 = smul.u32 8, %s20
      $region44: #{tpu_custom_call.1} parent=31 // pred_fallthru
        _
    $region32: #{tpu_custom_call.1} parent=5 // pred_fallthru
      _
    %p2132 = scmp.le.s32.totalorder 2, %s9
    // Predicated region
    $region45: #{tpu_custom_call.1} parent=5 // pred_check
      %p2133 = pneg %p2132
    $region46: #{tpu_custom_call.1} parent=5 // pred_check_branch
      %2135 = sbr.rel (%p2133) target = $region48
    $region47: #{tpu_custom_call.1} parent=5 // pred_region
      %s2136 = ssub.s32 %s9, 2
      // Predicated region
      $region49: #{tpu_custom_call.1} parent=47 // pred_check
        %p2137 = pneg %p143
      $region50: #{tpu_custom_call.1} parent=47 // pred_check_branch
        %2139 = sbr.rel (%p2137) target = $region52
      $region51: #{tpu_custom_call.1} parent=47 // pred_region
        %s2140 = smul.u32 8, %s23
        %p2141 = scmp.lt.s32.totalorder %s22, 1
        %s2142 = scalar_select %p2141, %s22, 1
        %p2143 = scmp.lt.s32.totalorder %s2140, 7
        %s2144 = scalar_select %p2143, %s2140, 7
        %s2145 = smul.addr %s2142, 8
        %s2146 = sadd.s32 %s2144, %s2145
        %s2147 = smul.addr %s2146, 8
        %s2148 = scalar_lea.vmem %s3, %s2147
      $region52: #{tpu_custom_call.1} parent=47 // pred_fallthru
        _
    $region48: #{tpu_custom_call.1} parent=5 // pred_fallthru
      _
  $region6: #{tpu_custom_call.1} parent=0 // loop_footer
    %s13 = sadd.s32 1, %s9
  $region7: #{tpu_custom_call.1} parent=0 // loop_footer_branch
    %8 = sbr.rel target = $region3
  $region8: #{tpu_custom_call.1} parent=0 // loop_exit
    _

</llo_original>
